<compile_context>
chip_gen: v6e
topology: v6e:2x2x1
jax: 0.10.0
libtpu: 0.0.40
codegen_flags: <defaults>
</compile_context>

<pallas_src>
import math
import jax
import jax.numpy as jnp
from jax import lax
from jax.experimental import pallas as pl
from jax.experimental.pallas import tpu as pltpu

_SQRT_HALF = 1.0 / math.sqrt(2.0)


def _gelu_exact(x):
    # torch.nn.functional.gelu default (erf-based, exact)
    return 0.5 * x * (1.0 + lax.erf(x * _SQRT_HALF))


def specatnet_kernel(x_ref, wb_ref, bb_ref, wqkv_ref, bqkv_ref,
                     wcomb_ref, bcomb_ref, o_ref):
    # x_ref     : (1, D_in, S*TB)   tokens in lanes, lane index = s*TB + b
    # wb_ref    : (E, D_in)   bb_ref   : (E, 1)
    # wqkv_ref  : (3E, E)     bqkv_ref : (3E, 1)   (q rows pre-scaled)
    # wcomb_ref : (LP, E)     bcomb_ref: (LP, 1)   (out_proj fused into logits)
    # o_ref     : (LP, TB)
    E = wb_ref.shape[0]
    LP, TB = o_ref.shape
    S = x_ref.shape[2] // TB

    x = x_ref[0]                                                   # (D_in, S*TB)

    # Base Linear + exact GELU: one MXU matmul, M=E, N=S*TB (lane-dense).
    h = jnp.dot(wb_ref[...], x, preferred_element_type=jnp.float32) + bb_ref[...]
    h = _gelu_exact(h)                                             # (E, S*TB)

    # Fused q|k|v projection: one MXU matmul; sublane slices are 8-aligned.
    qkv = (jnp.dot(wqkv_ref[...], h, preferred_element_type=jnp.float32)
           + bqkv_ref[...])                                        # (3E, S*TB)
    q = qkv[0:E, :]            # already scaled by 1/sqrt(E) in the wrapper
    k = qkv[E:2 * E, :]
    v = qkv[2 * E:3 * E, :]

    # Attention with the batch in lanes.  Every q_i / k_j / v_j is a static,
    # 128-aligned lane slab of shape (E, TB); scores[b, i, j] is a VPU
    # multiply + sublane reduce.  No batched matmul on the MXU.
    w_cols = jnp.zeros((S, TB), jnp.float32)      # (1/S)*sum_i attn[b, i, :]
    for i in range(S):
        qi = q[:, i * TB:(i + 1) * TB]                             # (E, TB)
        rows = []
        for j in range(S):
            kj = k[:, j * TB:(j + 1) * TB]                         # (E, TB)
            rows.append(jnp.sum(qi * kj, axis=0, keepdims=True))   # (1, TB)
        s_i = jnp.concatenate(rows, axis=0)                        # (S, TB)
        # softmax over j (sublane axis); exact reciprocal keeps 1e-5 parity
        # (pl.reciprocal(..., approx=True) is a drop-in under looser tol).
        m_i = jnp.max(s_i, axis=0, keepdims=True)
        e_i = jnp.exp(s_i - m_i)
        a_i = e_i * pl.reciprocal(jnp.sum(e_i, axis=0, keepdims=True))
        w_cols = w_cols + a_i

    # mean over the sequence commutes with the downstream affine maps:
    # pooled[e,b] = (1/S) sum_i sum_j attn[b,i,j] v[b,j,e]
    #             = sum_j ((1/S) sum_i attn[b,i,j]) * v_j[e,b]
    w_cols = w_cols * (1.0 / S)
    pooled = jnp.zeros((E, TB), jnp.float32)
    for j in range(S):
        vj = v[:, j * TB:(j + 1) * TB]                             # (E, TB)
        pooled = pooled + w_cols[j:j + 1, :] * vj                  # bcast MAC

    # Fused out_proj + logits Linear; (LP, TB) store is lane-dense.
    o_ref[...] = (jnp.dot(wcomb_ref[...], pooled,
                          preferred_element_type=jnp.float32)
                  + bcomb_ref[...])


def specatnet_forward(x, params, *, embed_dim, logits, tb=None):
    B, S, D_in = x.shape
    E = embed_dim
    wb, bb, win, bin_, wout, bout, wlog, blog = params
    f32 = jnp.float32

    # ---- weight prep (tiny, once per call) --------------------------------
    wbT = wb.T.astype(f32)                                  # (E, D_in)
    bbT = bb.reshape(-1, 1).astype(f32)                     # (E, 1)

    # fused q|k|v weight; fold the 1/sqrt(E) attention scale into the q rows
    scale = 1.0 / math.sqrt(E)
    qkv_scale = jnp.concatenate(
        [jnp.full((E, 1), scale, f32), jnp.ones((2 * E, 1), f32)], axis=0)
    wqkvT = win.T.astype(f32) * qkv_scale                   # (3E, E)
    bqkvT = bin_.reshape(-1, 1).astype(f32) * qkv_scale     # (3E, 1)

    # fold out_proj into the logits Linear (both affine; mean commutes).
    wcomb = jnp.dot(wout, wlog, precision=lax.Precision.HIGHEST)          # (E, L)
    bcomb = jnp.dot(bout, wlog, precision=lax.Precision.HIGHEST) + blog   # (1, L)
    LP = ((logits + 7) // 8) * 8                            # pad to sublane tile
    wcombT = jnp.zeros((LP, E), f32).at[:logits, :].set(wcomb.T)
    bcombT = jnp.zeros((LP, 1), f32).at[:logits, :].set(bcomb.T)

    # ---- batch tiling (batch in lanes) -------------------------------------
    if tb is None:
        # A few hundred+ rows per step amortizes the ~0.35us/step pipeline
        # overhead; keep >= 2 grid steps when B allows so the batch-tile axis
        # can shard across v7x's two TensorCores.
        half = (B + 1) // 2
        tb = min(1024, max(128, ((half + 127) // 128) * 128))
    else:
        tb = min(2048, max(128, ((tb + 127) // 128) * 128))
    nb = -(-B // tb)
    B_pad = nb * tb
    if B_pad != B:
        x = jnp.concatenate([x, jnp.zeros((B_pad - B, S, D_in), x.dtype)], axis=0)

    # Relayout in the wrapper: (nb, D_in, S*tb) with lane index = s*tb + b,
    # so every per-position q_i/k_j/v_j slab is a 128-aligned lane slice.
    x_t = (x.astype(f32).reshape(nb, tb, S, D_in)
             .transpose(0, 3, 2, 1).reshape(nb, D_in, S * tb))

    weights = (wbT, bbT, wqkvT, bqkvT, wcombT, bcombT)
    full = lambda a: pl.BlockSpec(a.shape, lambda b, _n=a.ndim: (0,) * _n)

    # VMEM: double-buffered x/out blocks + per-step intermediates, with margin.
    per_step = 4 * (2 * D_in * S * tb + 2 * LP * tb + S * tb * (6 * E + 2 * S))
    vmem_limit = int(min(64 * 2 ** 20, max(32 * 2 ** 20, 4 * per_step)))

    cost = pl.CostEstimate(
        flops=int(2 * B_pad * S * (D_in * E + 3 * E * E + S * E + E)
                  + 2 * B_pad * E * LP + 6 * B_pad * S * S),
        transcendentals=int(B_pad * S * (E + S)),          # erf + exp
        bytes_accessed=int(4 * (x_t.size + LP * B_pad
                                + sum(w.size for w in weights))),
    )

    out_t = pl.pallas_call(
        specatnet_kernel,
        out_shape=jax.ShapeDtypeStruct((LP, B_pad), f32),
        grid=(nb,),
        in_specs=[pl.BlockSpec((1, D_in, S * tb), lambda b: (b, 0, 0))]
                 + [full(w) for w in weights],
        out_specs=pl.BlockSpec((LP, tb), lambda b: (0, b)),
        compiler_params=pltpu.CompilerParams(
            dimension_semantics=("parallel",),
            vmem_limit_bytes=vmem_limit),
        cost_estimate=cost,
    )(x_t, *weights)

    return out_t[:logits, :B].T                              # (B, logits)


def specatnet_reference(x, params, *, embed_dim):
    """Pure-JAX reference replicating the PyTorch forward semantics."""
    wb, bb, win, bin_, wout, bout, wlog, blog = params
    h = _gelu_exact(jnp.einsum('bsd,de->bse', x, wb) + bb)
    qkv = jnp.einsum('bse,ef->bsf', h, win) + bin_
    E = embed_dim
    q, k, v = qkv[..., :E], qkv[..., E:2 * E], qkv[..., 2 * E:]
    scores = jnp.einsum('bqe,bke->bqk', q, k) / math.sqrt(E)
    attn = jax.nn.softmax(scores, axis=-1)
    ctx = jnp.einsum('bqk,bke->bqe', attn, v)
    att_out = jnp.einsum('bse,ef->bsf', ctx, wout) + bout
    pooled = jnp.mean(att_out, axis=1)
    return jnp.einsum('be,el->bl', pooled, wlog) + blog


if __name__ == "__main__":
    # Shapes consistent with the module: embed_dim=8, logits=5, base=Linear(16->8).
    # B=200 with the default tb=128 gives a 2-step grid (exercises tiling and
    # the padded batch tail); a second B=13 call exercises a single padded tile.
    B, S, D_in, E, L = 200, 8, 16, 8, 5

    key = jax.random.PRNGKey(0)
    ks = jax.random.split(key, 9)
    scale = 0.1
    params = (
        scale * jax.random.normal(ks[0], (D_in, E), jnp.float32),   # base Linear W
        scale * jax.random.normal(ks[1], (1, E), jnp.float32),      # base Linear b
        scale * jax.random.normal(ks[2], (E, 3 * E), jnp.float32),  # MHA in_proj W (q|k|v)
        scale * jax.random.normal(ks[3], (1, 3 * E), jnp.float32),  # MHA in_proj b
        scale * jax.random.normal(ks[4], (E, E), jnp.float32),      # MHA out_proj W
        scale * jax.random.normal(ks[5], (1, E), jnp.float32),      # MHA out_proj b
        scale * jax.random.normal(ks[6], (E, L), jnp.float32),      # logits Linear W
        scale * jax.random.normal(ks[7], (1, L), jnp.float32),      # logits Linear b
    )
    x = jax.random.normal(ks[8], (B, S, D_in), jnp.float32)

    ref = specatnet_reference(x, params, embed_dim=E)

    out = specatnet_forward(x, params, embed_dim=E, logits=L)
    out = jax.block_until_ready(out)
    assert out.shape == (B, L), out.shape
    assert jnp.allclose(out, ref, atol=1e-5, rtol=1e-5), (out, ref)

    out_small = specatnet_forward(x[:13], params, embed_dim=E, logits=L)
    out_small = jax.block_until_ready(out_small)
    assert out_small.shape == (13, L), out_small.shape
    assert jnp.allclose(out_small, ref[:13], atol=1e-5, rtol=1e-5), (out_small, ref[:13])

    print("KERNEL_OK")
</pallas_src>

<mosaic_0001>
module attributes {stable_mosaic.version = 11 : i64} {
  func.func @specatnet_kernel(%arg0: i32, %arg1: memref<1x16x1024xf32, #tpu.memory_space<vmem>>, %arg2: memref<8x16xf32, #tpu.memory_space<vmem>>, %arg3: memref<8x1xf32, #tpu.memory_space<vmem>>, %arg4: memref<24x8xf32, #tpu.memory_space<vmem>>, %arg5: memref<24x1xf32, #tpu.memory_space<vmem>>, %arg6: memref<8x8xf32, #tpu.memory_space<vmem>>, %arg7: memref<8x1xf32, #tpu.memory_space<vmem>>, %arg8: memref<8x128xf32, #tpu.memory_space<vmem>>) attributes {dimension_semantics = [#tpu.dimension_semantics<parallel>], iteration_bounds = array<i64: 2>, scalar_prefetch = 0 : i64, scratch_operands = 0 : i64, tpu.core_type = #tpu.core_type<tc>, window_params = [{transform_indices = @transform_0, window_bounds = array<i64: 1, 16, 1024>}, {pipeline_mode = #tpu.pipeline_mode<synchronous>, transform_indices = @transform_1, window_bounds = array<i64: 8, 16>}, {pipeline_mode = #tpu.pipeline_mode<synchronous>, transform_indices = @transform_2, window_bounds = array<i64: 8, 1>}, {pipeline_mode = #tpu.pipeline_mode<synchronous>, transform_indices = @transform_3, window_bounds = array<i64: 24, 8>}, {pipeline_mode = #tpu.pipeline_mode<synchronous>, transform_indices = @transform_4, window_bounds = array<i64: 24, 1>}, {pipeline_mode = #tpu.pipeline_mode<synchronous>, transform_indices = @transform_5, window_bounds = array<i64: 8, 8>}, {pipeline_mode = #tpu.pipeline_mode<synchronous>, transform_indices = @transform_6, window_bounds = array<i64: 8, 1>}, {transform_indices = @transform_7, window_bounds = array<i64: 8, 128>}]} {
    %c0 = arith.constant 0 : index
    %c0_0 = arith.constant 0 : index
    %c0_1 = arith.constant 0 : index
    %0 = vector.load %arg1[%c0, %c0_0, %c0_1] : memref<1x16x1024xf32, #tpu.memory_space<vmem>>, vector<1x16x1024xf32>
    %1 = vector.shape_cast %0 : vector<1x16x1024xf32> to vector<16x1024xf32>
    %c0_2 = arith.constant 0 : index
    %c0_3 = arith.constant 0 : index
    %2 = vector.load %arg2[%c0_2, %c0_3] : memref<8x16xf32, #tpu.memory_space<vmem>>, vector<8x16xf32>
    %cst = arith.constant dense<0.000000e+00> : vector<8x1024xf32>
    %3 = tpu.matmul %2, %1, %cst {dimension_numbers = #tpu.dot_dimension_numbers<[1], [0], [0], [1], [0, 0, 1, 1], [], []>} : vector<8x16xf32>, vector<16x1024xf32>, vector<8x1024xf32> -> vector<8x1024xf32>
    %c0_4 = arith.constant 0 : index
    %c0_5 = arith.constant 0 : index
    %4 = vector.load %arg3[%c0_4, %c0_5] : memref<8x1xf32, #tpu.memory_space<vmem>>, vector<8x1xf32>
    %5 = vector.broadcast %4 : vector<8x1xf32> to vector<8x1024xf32>
    %6 = arith.addf %3, %5 : vector<8x1024xf32>
    %cst_6 = arith.constant 5.000000e-01 : f32
    %7 = vector.broadcast %cst_6 : f32 to vector<8x1024xf32>
    %8 = arith.mulf %7, %6 : vector<8x1024xf32>
    %cst_7 = arith.constant 0.707106769 : f32
    %9 = vector.broadcast %cst_7 : f32 to vector<8x1024xf32>
    %10 = arith.mulf %6, %9 : vector<8x1024xf32>
    %11 = math.erf %10 : vector<8x1024xf32>
    %cst_8 = arith.constant 1.000000e+00 : f32
    %12 = vector.broadcast %cst_8 : f32 to vector<8x1024xf32>
    %13 = arith.addf %12, %11 : vector<8x1024xf32>
    %14 = arith.mulf %8, %13 : vector<8x1024xf32>
    %c0_9 = arith.constant 0 : index
    %c0_10 = arith.constant 0 : index
    %15 = vector.load %arg4[%c0_9, %c0_10] : memref<24x8xf32, #tpu.memory_space<vmem>>, vector<24x8xf32>
    %cst_11 = arith.constant dense<0.000000e+00> : vector<24x1024xf32>
    %16 = tpu.matmul %15, %14, %cst_11 {dimension_numbers = #tpu.dot_dimension_numbers<[1], [0], [0], [1], [0, 0, 1, 1], [], []>} : vector<24x8xf32>, vector<8x1024xf32>, vector<24x1024xf32> -> vector<24x1024xf32>
    %c0_12 = arith.constant 0 : index
    %c0_13 = arith.constant 0 : index
    %17 = vector.load %arg5[%c0_12, %c0_13] : memref<24x1xf32, #tpu.memory_space<vmem>>, vector<24x1xf32>
    %18 = vector.broadcast %17 : vector<24x1xf32> to vector<24x1024xf32>
    %19 = arith.addf %16, %18 : vector<24x1024xf32>
    %20 = vector.extract_strided_slice %19 {offsets = [0, 0], sizes = [8, 1024], strides = [1, 1]} : vector<24x1024xf32> to vector<8x1024xf32>
    %21 = vector.extract_strided_slice %19 {offsets = [8, 0], sizes = [8, 1024], strides = [1, 1]} : vector<24x1024xf32> to vector<8x1024xf32>
    %22 = vector.extract_strided_slice %19 {offsets = [16, 0], sizes = [8, 1024], strides = [1, 1]} : vector<24x1024xf32> to vector<8x1024xf32>
    %cst_14 = arith.constant 0.000000e+00 : f32
    %23 = vector.broadcast %cst_14 : f32 to vector<8x128xf32>
    %24 = vector.extract_strided_slice %20 {offsets = [0, 0], sizes = [8, 128], strides = [1, 1]} : vector<8x1024xf32> to vector<8x128xf32>
    %25 = vector.extract_strided_slice %21 {offsets = [0, 0], sizes = [8, 128], strides = [1, 1]} : vector<8x1024xf32> to vector<8x128xf32>
    %26 = arith.mulf %24, %25 : vector<8x128xf32>
    %cst_15 = arith.constant dense<0.000000e+00> : vector<128xf32>
    %27 = vector.multi_reduction <add>, %26, %cst_15 [0] : vector<8x128xf32> to vector<128xf32>
    %28 = vector.shape_cast %27 : vector<128xf32> to vector<1x128xf32>
    %29 = vector.extract_strided_slice %21 {offsets = [0, 128], sizes = [8, 128], strides = [1, 1]} : vector<8x1024xf32> to vector<8x128xf32>
    %30 = arith.mulf %24, %29 : vector<8x128xf32>
    %cst_16 = arith.constant dense<0.000000e+00> : vector<128xf32>
    %31 = vector.multi_reduction <add>, %30, %cst_16 [0] : vector<8x128xf32> to vector<128xf32>
    %32 = vector.shape_cast %31 : vector<128xf32> to vector<1x128xf32>
    %33 = vector.extract_strided_slice %21 {offsets = [0, 256], sizes = [8, 128], strides = [1, 1]} : vector<8x1024xf32> to vector<8x128xf32>
    %34 = arith.mulf %24, %33 : vector<8x128xf32>
    %cst_17 = arith.constant dense<0.000000e+00> : vector<128xf32>
    %35 = vector.multi_reduction <add>, %34, %cst_17 [0] : vector<8x128xf32> to vector<128xf32>
    %36 = vector.shape_cast %35 : vector<128xf32> to vector<1x128xf32>
    %37 = vector.extract_strided_slice %21 {offsets = [0, 384], sizes = [8, 128], strides = [1, 1]} : vector<8x1024xf32> to vector<8x128xf32>
    %38 = arith.mulf %24, %37 : vector<8x128xf32>
    %cst_18 = arith.constant dense<0.000000e+00> : vector<128xf32>
    %39 = vector.multi_reduction <add>, %38, %cst_18 [0] : vector<8x128xf32> to vector<128xf32>
    %40 = vector.shape_cast %39 : vector<128xf32> to vector<1x128xf32>
    %41 = vector.extract_strided_slice %21 {offsets = [0, 512], sizes = [8, 128], strides = [1, 1]} : vector<8x1024xf32> to vector<8x128xf32>
    %42 = arith.mulf %24, %41 : vector<8x128xf32>
    %cst_19 = arith.constant dense<0.000000e+00> : vector<128xf32>
    %43 = vector.multi_reduction <add>, %42, %cst_19 [0] : vector<8x128xf32> to vector<128xf32>
    %44 = vector.shape_cast %43 : vector<128xf32> to vector<1x128xf32>
    %45 = vector.extract_strided_slice %21 {offsets = [0, 640], sizes = [8, 128], strides = [1, 1]} : vector<8x1024xf32> to vector<8x128xf32>
    %46 = arith.mulf %24, %45 : vector<8x128xf32>
    %cst_20 = arith.constant dense<0.000000e+00> : vector<128xf32>
    %47 = vector.multi_reduction <add>, %46, %cst_20 [0] : vector<8x128xf32> to vector<128xf32>
    %48 = vector.shape_cast %47 : vector<128xf32> to vector<1x128xf32>
    %49 = vector.extract_strided_slice %21 {offsets = [0, 768], sizes = [8, 128], strides = [1, 1]} : vector<8x1024xf32> to vector<8x128xf32>
    %50 = arith.mulf %24, %49 : vector<8x128xf32>
    %cst_21 = arith.constant dense<0.000000e+00> : vector<128xf32>
    %51 = vector.multi_reduction <add>, %50, %cst_21 [0] : vector<8x128xf32> to vector<128xf32>
    %52 = vector.shape_cast %51 : vector<128xf32> to vector<1x128xf32>
    %53 = vector.extract_strided_slice %21 {offsets = [0, 896], sizes = [8, 128], strides = [1, 1]} : vector<8x1024xf32> to vector<8x128xf32>
    %54 = arith.mulf %24, %53 : vector<8x128xf32>
    %cst_22 = arith.constant dense<0.000000e+00> : vector<128xf32>
    %55 = vector.multi_reduction <add>, %54, %cst_22 [0] : vector<8x128xf32> to vector<128xf32>
    %56 = vector.shape_cast %55 : vector<128xf32> to vector<1x128xf32>
    %57 = tpu.concatenate %28, %32, %36, %40, %44, %48, %52, %56 in 0 : vector<1x128xf32>, vector<1x128xf32>, vector<1x128xf32>, vector<1x128xf32>, vector<1x128xf32>, vector<1x128xf32>, vector<1x128xf32>, vector<1x128xf32> -> vector<8x128xf32>
    %cst_23 = arith.constant dense<0xFF800000> : vector<128xf32>
    %58 = vector.multi_reduction <maximumf>, %57, %cst_23 [0] : vector<8x128xf32> to vector<128xf32>
    %59 = vector.shape_cast %58 : vector<128xf32> to vector<1x128xf32>
    %60 = vector.broadcast %59 : vector<1x128xf32> to vector<8x128xf32>
    %61 = arith.subf %57, %60 : vector<8x128xf32>
    %62 = math.exp %61 : vector<8x128xf32>
    %cst_24 = arith.constant dense<0.000000e+00> : vector<128xf32>
    %63 = vector.multi_reduction <add>, %62, %cst_24 [0] : vector<8x128xf32> to vector<128xf32>
    %64 = vector.shape_cast %63 : vector<128xf32> to vector<1x128xf32>
    %65 = tpu.reciprocal %64 : vector<1x128xf32> -> vector<1x128xf32>
    %66 = vector.broadcast %65 : vector<1x128xf32> to vector<8x128xf32>
    %67 = arith.mulf %62, %66 : vector<8x128xf32>
    %68 = arith.addf %23, %67 : vector<8x128xf32>
    %69 = vector.extract_strided_slice %20 {offsets = [0, 128], sizes = [8, 128], strides = [1, 1]} : vector<8x1024xf32> to vector<8x128xf32>
    %70 = vector.extract_strided_slice %21 {offsets = [0, 0], sizes = [8, 128], strides = [1, 1]} : vector<8x1024xf32> to vector<8x128xf32>
    %71 = arith.mulf %69, %70 : vector<8x128xf32>
    %cst_25 = arith.constant dense<0.000000e+00> : vector<128xf32>
    %72 = vector.multi_reduction <add>, %71, %cst_25 [0] : vector<8x128xf32> to vector<128xf32>
    %73 = vector.shape_cast %72 : vector<128xf32> to vector<1x128xf32>
    %74 = vector.extract_strided_slice %21 {offsets = [0, 128], sizes = [8, 128], strides = [1, 1]} : vector<8x1024xf32> to vector<8x128xf32>
    %75 = arith.mulf %69, %74 : vector<8x128xf32>
    %cst_26 = arith.constant dense<0.000000e+00> : vector<128xf32>
    %76 = vector.multi_reduction <add>, %75, %cst_26 [0] : vector<8x128xf32> to vector<128xf32>
    %77 = vector.shape_cast %76 : vector<128xf32> to vector<1x128xf32>
    %78 = vector.extract_strided_slice %21 {offsets = [0, 256], sizes = [8, 128], strides = [1, 1]} : vector<8x1024xf32> to vector<8x128xf32>
    %79 = arith.mulf %69, %78 : vector<8x128xf32>
    %cst_27 = arith.constant dense<0.000000e+00> : vector<128xf32>
    %80 = vector.multi_reduction <add>, %79, %cst_27 [0] : vector<8x128xf32> to vector<128xf32>
    %81 = vector.shape_cast %80 : vector<128xf32> to vector<1x128xf32>
    %82 = vector.extract_strided_slice %21 {offsets = [0, 384], sizes = [8, 128], strides = [1, 1]} : vector<8x1024xf32> to vector<8x128xf32>
    %83 = arith.mulf %69, %82 : vector<8x128xf32>
    %cst_28 = arith.constant dense<0.000000e+00> : vector<128xf32>
    %84 = vector.multi_reduction <add>, %83, %cst_28 [0] : vector<8x128xf32> to vector<128xf32>
    %85 = vector.shape_cast %84 : vector<128xf32> to vector<1x128xf32>
    %86 = vector.extract_strided_slice %21 {offsets = [0, 512], sizes = [8, 128], strides = [1, 1]} : vector<8x1024xf32> to vector<8x128xf32>
    %87 = arith.mulf %69, %86 : vector<8x128xf32>
    %cst_29 = arith.constant dense<0.000000e+00> : vector<128xf32>
    %88 = vector.multi_reduction <add>, %87, %cst_29 [0] : vector<8x128xf32> to vector<128xf32>
    %89 = vector.shape_cast %88 : vector<128xf32> to vector<1x128xf32>
    %90 = vector.extract_strided_slice %21 {offsets = [0, 640], sizes = [8, 128], strides = [1, 1]} : vector<8x1024xf32> to vector<8x128xf32>
    %91 = arith.mulf %69, %90 : vector<8x128xf32>
    %cst_30 = arith.constant dense<0.000000e+00> : vector<128xf32>
    %92 = vector.multi_reduction <add>, %91, %cst_30 [0] : vector<8x128xf32> to vector<128xf32>
    %93 = vector.shape_cast %92 : vector<128xf32> to vector<1x128xf32>
    %94 = vector.extract_strided_slice %21 {offsets = [0, 768], sizes = [8, 128], strides = [1, 1]} : vector<8x1024xf32> to vector<8x128xf32>
    %95 = arith.mulf %69, %94 : vector<8x128xf32>
    %cst_31 = arith.constant dense<0.000000e+00> : vector<128xf32>
    %96 = vector.multi_reduction <add>, %95, %cst_31 [0] : vector<8x128xf32> to vector<128xf32>
    %97 = vector.shape_cast %96 : vector<128xf32> to vector<1x128xf32>
    %98 = vector.extract_strided_slice %21 {offsets = [0, 896], sizes = [8, 128], strides = [1, 1]} : vector<8x1024xf32> to vector<8x128xf32>
    %99 = arith.mulf %69, %98 : vector<8x128xf32>
    %cst_32 = arith.constant dense<0.000000e+00> : vector<128xf32>
    %100 = vector.multi_reduction <add>, %99, %cst_32 [0] : vector<8x128xf32> to vector<128xf32>
    %101 = vector.shape_cast %100 : vector<128xf32> to vector<1x128xf32>
    %102 = tpu.concatenate %73, %77, %81, %85, %89, %93, %97, %101 in 0 : vector<1x128xf32>, vector<1x128xf32>, vector<1x128xf32>, vector<1x128xf32>, vector<1x128xf32>, vector<1x128xf32>, vector<1x128xf32>, vector<1x128xf32> -> vector<8x128xf32>
    %cst_33 = arith.constant dense<0xFF800000> : vector<128xf32>
    %103 = vector.multi_reduction <maximumf>, %102, %cst_33 [0] : vector<8x128xf32> to vector<128xf32>
    %104 = vector.shape_cast %103 : vector<128xf32> to vector<1x128xf32>
    %105 = vector.broadcast %104 : vector<1x128xf32> to vector<8x128xf32>
    %106 = arith.subf %102, %105 : vector<8x128xf32>
    %107 = math.exp %106 : vector<8x128xf32>
    %cst_34 = arith.constant dense<0.000000e+00> : vector<128xf32>
    %108 = vector.multi_reduction <add>, %107, %cst_34 [0] : vector<8x128xf32> to vector<128xf32>
    %109 = vector.shape_cast %108 : vector<128xf32> to vector<1x128xf32>
    %110 = tpu.reciprocal %109 : vector<1x128xf32> -> vector<1x128xf32>
    %111 = vector.broadcast %110 : vector<1x128xf32> to vector<8x128xf32>
    %112 = arith.mulf %107, %111 : vector<8x128xf32>
    %113 = arith.addf %68, %112 : vector<8x128xf32>
    %114 = vector.extract_strided_slice %20 {offsets = [0, 256], sizes = [8, 128], strides = [1, 1]} : vector<8x1024xf32> to vector<8x128xf32>
    %115 = vector.extract_strided_slice %21 {offsets = [0, 0], sizes = [8, 128], strides = [1, 1]} : vector<8x1024xf32> to vector<8x128xf32>
    %116 = arith.mulf %114, %115 : vector<8x128xf32>
    %cst_35 = arith.constant dense<0.000000e+00> : vector<128xf32>
    %117 = vector.multi_reduction <add>, %116, %cst_35 [0] : vector<8x128xf32> to vector<128xf32>
    %118 = vector.shape_cast %117 : vector<128xf32> to vector<1x128xf32>
    %119 = vector.extract_strided_slice %21 {offsets = [0, 128], sizes = [8, 128], strides = [1, 1]} : vector<8x1024xf32> to vector<8x128xf32>
    %120 = arith.mulf %114, %119 : vector<8x128xf32>
    %cst_36 = arith.constant dense<0.000000e+00> : vector<128xf32>
    %121 = vector.multi_reduction <add>, %120, %cst_36 [0] : vector<8x128xf32> to vector<128xf32>
    %122 = vector.shape_cast %121 : vector<128xf32> to vector<1x128xf32>
    %123 = vector.extract_strided_slice %21 {offsets = [0, 256], sizes = [8, 128], strides = [1, 1]} : vector<8x1024xf32> to vector<8x128xf32>
    %124 = arith.mulf %114, %123 : vector<8x128xf32>
    %cst_37 = arith.constant dense<0.000000e+00> : vector<128xf32>
    %125 = vector.multi_reduction <add>, %124, %cst_37 [0] : vector<8x128xf32> to vector<128xf32>
    %126 = vector.shape_cast %125 : vector<128xf32> to vector<1x128xf32>
    %127 = vector.extract_strided_slice %21 {offsets = [0, 384], sizes = [8, 128], strides = [1, 1]} : vector<8x1024xf32> to vector<8x128xf32>
    %128 = arith.mulf %114, %127 : vector<8x128xf32>
    %cst_38 = arith.constant dense<0.000000e+00> : vector<128xf32>
    %129 = vector.multi_reduction <add>, %128, %cst_38 [0] : vector<8x128xf32> to vector<128xf32>
    %130 = vector.shape_cast %129 : vector<128xf32> to vector<1x128xf32>
    %131 = vector.extract_strided_slice %21 {offsets = [0, 512], sizes = [8, 128], strides = [1, 1]} : vector<8x1024xf32> to vector<8x128xf32>
    %132 = arith.mulf %114, %131 : vector<8x128xf32>
    %cst_39 = arith.constant dense<0.000000e+00> : vector<128xf32>
    %133 = vector.multi_reduction <add>, %132, %cst_39 [0] : vector<8x128xf32> to vector<128xf32>
    %134 = vector.shape_cast %133 : vector<128xf32> to vector<1x128xf32>
    %135 = vector.extract_strided_slice %21 {offsets = [0, 640], sizes = [8, 128], strides = [1, 1]} : vector<8x1024xf32> to vector<8x128xf32>
    %136 = arith.mulf %114, %135 : vector<8x128xf32>
    %cst_40 = arith.constant dense<0.000000e+00> : vector<128xf32>
    %137 = vector.multi_reduction <add>, %136, %cst_40 [0] : vector<8x128xf32> to vector<128xf32>
    %138 = vector.shape_cast %137 : vector<128xf32> to vector<1x128xf32>
    %139 = vector.extract_strided_slice %21 {offsets = [0, 768], sizes = [8, 128], strides = [1, 1]} : vector<8x1024xf32> to vector<8x128xf32>
    %140 = arith.mulf %114, %139 : vector<8x128xf32>
    %cst_41 = arith.constant dense<0.000000e+00> : vector<128xf32>
    %141 = vector.multi_reduction <add>, %140, %cst_41 [0] : vector<8x128xf32> to vector<128xf32>
    %142 = vector.shape_cast %141 : vector<128xf32> to vector<1x128xf32>
    %143 = vector.extract_strided_slice %21 {offsets = [0, 896], sizes = [8, 128], strides = [1, 1]} : vector<8x1024xf32> to vector<8x128xf32>
    %144 = arith.mulf %114, %143 : vector<8x128xf32>
    %cst_42 = arith.constant dense<0.000000e+00> : vector<128xf32>
    %145 = vector.multi_reduction <add>, %144, %cst_42 [0] : vector<8x128xf32> to vector<128xf32>
    %146 = vector.shape_cast %145 : vector<128xf32> to vector<1x128xf32>
    %147 = tpu.concatenate %118, %122, %126, %130, %134, %138, %142, %146 in 0 : vector<1x128xf32>, vector<1x128xf32>, vector<1x128xf32>, vector<1x128xf32>, vector<1x128xf32>, vector<1x128xf32>, vector<1x128xf32>, vector<1x128xf32> -> vector<8x128xf32>
    %cst_43 = arith.constant dense<0xFF800000> : vector<128xf32>
    %148 = vector.multi_reduction <maximumf>, %147, %cst_43 [0] : vector<8x128xf32> to vector<128xf32>
    %149 = vector.shape_cast %148 : vector<128xf32> to vector<1x128xf32>
    %150 = vector.broadcast %149 : vector<1x128xf32> to vector<8x128xf32>
    %151 = arith.subf %147, %150 : vector<8x128xf32>
    %152 = math.exp %151 : vector<8x128xf32>
    %cst_44 = arith.constant dense<0.000000e+00> : vector<128xf32>
    %153 = vector.multi_reduction <add>, %152, %cst_44 [0] : vector<8x128xf32> to vector<128xf32>
    %154 = vector.shape_cast %153 : vector<128xf32> to vector<1x128xf32>
    %155 = tpu.reciprocal %154 : vector<1x128xf32> -> vector<1x128xf32>
    %156 = vector.broadcast %155 : vector<1x128xf32> to vector<8x128xf32>
    %157 = arith.mulf %152, %156 : vector<8x128xf32>
    %158 = arith.addf %113, %157 : vector<8x128xf32>
    %159 = vector.extract_strided_slice %20 {offsets = [0, 384], sizes = [8, 128], strides = [1, 1]} : vector<8x1024xf32> to vector<8x128xf32>
    %160 = vector.extract_strided_slice %21 {offsets = [0, 0], sizes = [8, 128], strides = [1, 1]} : vector<8x1024xf32> to vector<8x128xf32>
    %161 = arith.mulf %159, %160 : vector<8x128xf32>
    %cst_45 = arith.constant dense<0.000000e+00> : vector<128xf32>
    %162 = vector.multi_reduction <add>, %161, %cst_45 [0] : vector<8x128xf32> to vector<128xf32>
    %163 = vector.shape_cast %162 : vector<128xf32> to vector<1x128xf32>
    %164 = vector.extract_strided_slice %21 {offsets = [0, 128], sizes = [8, 128], strides = [1, 1]} : vector<8x1024xf32> to vector<8x128xf32>
    %165 = arith.mulf %159, %164 : vector<8x128xf32>
    %cst_46 = arith.constant dense<0.000000e+00> : vector<128xf32>
    %166 = vector.multi_reduction <add>, %165, %cst_46 [0] : vector<8x128xf32> to vector<128xf32>
    %167 = vector.shape_cast %166 : vector<128xf32> to vector<1x128xf32>
    %168 = vector.extract_strided_slice %21 {offsets = [0, 256], sizes = [8, 128], strides = [1, 1]} : vector<8x1024xf32> to vector<8x128xf32>
    %169 = arith.mulf %159, %168 : vector<8x128xf32>
    %cst_47 = arith.constant dense<0.000000e+00> : vector<128xf32>
    %170 = vector.multi_reduction <add>, %169, %cst_47 [0] : vector<8x128xf32> to vector<128xf32>
    %171 = vector.shape_cast %170 : vector<128xf32> to vector<1x128xf32>
    %172 = vector.extract_strided_slice %21 {offsets = [0, 384], sizes = [8, 128], strides = [1, 1]} : vector<8x1024xf32> to vector<8x128xf32>
    %173 = arith.mulf %159, %172 : vector<8x128xf32>
    %cst_48 = arith.constant dense<0.000000e+00> : vector<128xf32>
    %174 = vector.multi_reduction <add>, %173, %cst_48 [0] : vector<8x128xf32> to vector<128xf32>
    %175 = vector.shape_cast %174 : vector<128xf32> to vector<1x128xf32>
    %176 = vector.extract_strided_slice %21 {offsets = [0, 512], sizes = [8, 128], strides = [1, 1]} : vector<8x1024xf32> to vector<8x128xf32>
    %177 = arith.mulf %159, %176 : vector<8x128xf32>
    %cst_49 = arith.constant dense<0.000000e+00> : vector<128xf32>
    %178 = vector.multi_reduction <add>, %177, %cst_49 [0] : vector<8x128xf32> to vector<128xf32>
    %179 = vector.shape_cast %178 : vector<128xf32> to vector<1x128xf32>
    %180 = vector.extract_strided_slice %21 {offsets = [0, 640], sizes = [8, 128], strides = [1, 1]} : vector<8x1024xf32> to vector<8x128xf32>
    %181 = arith.mulf %159, %180 : vector<8x128xf32>
    %cst_50 = arith.constant dense<0.000000e+00> : vector<128xf32>
    %182 = vector.multi_reduction <add>, %181, %cst_50 [0] : vector<8x128xf32> to vector<128xf32>
    %183 = vector.shape_cast %182 : vector<128xf32> to vector<1x128xf32>
    %184 = vector.extract_strided_slice %21 {offsets = [0, 768], sizes = [8, 128], strides = [1, 1]} : vector<8x1024xf32> to vector<8x128xf32>
    %185 = arith.mulf %159, %184 : vector<8x128xf32>
    %cst_51 = arith.constant dense<0.000000e+00> : vector<128xf32>
    %186 = vector.multi_reduction <add>, %185, %cst_51 [0] : vector<8x128xf32> to vector<128xf32>
    %187 = vector.shape_cast %186 : vector<128xf32> to vector<1x128xf32>
    %188 = vector.extract_strided_slice %21 {offsets = [0, 896], sizes = [8, 128], strides = [1, 1]} : vector<8x1024xf32> to vector<8x128xf32>
    %189 = arith.mulf %159, %188 : vector<8x128xf32>
    %cst_52 = arith.constant dense<0.000000e+00> : vector<128xf32>
    %190 = vector.multi_reduction <add>, %189, %cst_52 [0] : vector<8x128xf32> to vector<128xf32>
    %191 = vector.shape_cast %190 : vector<128xf32> to vector<1x128xf32>
    %192 = tpu.concatenate %163, %167, %171, %175, %179, %183, %187, %191 in 0 : vector<1x128xf32>, vector<1x128xf32>, vector<1x128xf32>, vector<1x128xf32>, vector<1x128xf32>, vector<1x128xf32>, vector<1x128xf32>, vector<1x128xf32> -> vector<8x128xf32>
    %cst_53 = arith.constant dense<0xFF800000> : vector<128xf32>
    %193 = vector.multi_reduction <maximumf>, %192, %cst_53 [0] : vector<8x128xf32> to vector<128xf32>
    %194 = vector.shape_cast %193 : vector<128xf32> to vector<1x128xf32>
    %195 = vector.broadcast %194 : vector<1x128xf32> to vector<8x128xf32>
    %196 = arith.subf %192, %195 : vector<8x128xf32>
    %197 = math.exp %196 : vector<8x128xf32>
    %cst_54 = arith.constant dense<0.000000e+00> : vector<128xf32>
    %198 = vector.multi_reduction <add>, %197, %cst_54 [0] : vector<8x128xf32> to vector<128xf32>
    %199 = vector.shape_cast %198 : vector<128xf32> to vector<1x128xf32>
    %200 = tpu.reciprocal %199 : vector<1x128xf32> -> vector<1x128xf32>
    %201 = vector.broadcast %200 : vector<1x128xf32> to vector<8x128xf32>
    %202 = arith.mulf %197, %201 : vector<8x128xf32>
    %203 = arith.addf %158, %202 : vector<8x128xf32>
    %204 = vector.extract_strided_slice %20 {offsets = [0, 512], sizes = [8, 128], strides = [1, 1]} : vector<8x1024xf32> to vector<8x128xf32>
    %205 = vector.extract_strided_slice %21 {offsets = [0, 0], sizes = [8, 128], strides = [1, 1]} : vector<8x1024xf32> to vector<8x128xf32>
    %206 = arith.mulf %204, %205 : vector<8x128xf32>
    %cst_55 = arith.constant dense<0.000000e+00> : vector<128xf32>
    %207 = vector.multi_reduction <add>, %206, %cst_55 [0] : vector<8x128xf32> to vector<128xf32>
    %208 = vector.shape_cast %207 : vector<128xf32> to vector<1x128xf32>
    %209 = vector.extract_strided_slice %21 {offsets = [0, 128], sizes = [8, 128], strides = [1, 1]} : vector<8x1024xf32> to vector<8x128xf32>
    %210 = arith.mulf %204, %209 : vector<8x128xf32>
    %cst_56 = arith.constant dense<0.000000e+00> : vector<128xf32>
    %211 = vector.multi_reduction <add>, %210, %cst_56 [0] : vector<8x128xf32> to vector<128xf32>
    %212 = vector.shape_cast %211 : vector<128xf32> to vector<1x128xf32>
    %213 = vector.extract_strided_slice %21 {offsets = [0, 256], sizes = [8, 128], strides = [1, 1]} : vector<8x1024xf32> to vector<8x128xf32>
    %214 = arith.mulf %204, %213 : vector<8x128xf32>
    %cst_57 = arith.constant dense<0.000000e+00> : vector<128xf32>
    %215 = vector.multi_reduction <add>, %214, %cst_57 [0] : vector<8x128xf32> to vector<128xf32>
    %216 = vector.shape_cast %215 : vector<128xf32> to vector<1x128xf32>
    %217 = vector.extract_strided_slice %21 {offsets = [0, 384], sizes = [8, 128], strides = [1, 1]} : vector<8x1024xf32> to vector<8x128xf32>
    %218 = arith.mulf %204, %217 : vector<8x128xf32>
    %cst_58 = arith.constant dense<0.000000e+00> : vector<128xf32>
    %219 = vector.multi_reduction <add>, %218, %cst_58 [0] : vector<8x128xf32> to vector<128xf32>
    %220 = vector.shape_cast %219 : vector<128xf32> to vector<1x128xf32>
    %221 = vector.extract_strided_slice %21 {offsets = [0, 512], sizes = [8, 128], strides = [1, 1]} : vector<8x1024xf32> to vector<8x128xf32>
    %222 = arith.mulf %204, %221 : vector<8x128xf32>
    %cst_59 = arith.constant dense<0.000000e+00> : vector<128xf32>
    %223 = vector.multi_reduction <add>, %222, %cst_59 [0] : vector<8x128xf32> to vector<128xf32>
    %224 = vector.shape_cast %223 : vector<128xf32> to vector<1x128xf32>
    %225 = vector.extract_strided_slice %21 {offsets = [0, 640], sizes = [8, 128], strides = [1, 1]} : vector<8x1024xf32> to vector<8x128xf32>
    %226 = arith.mulf %204, %225 : vector<8x128xf32>
    %cst_60 = arith.constant dense<0.000000e+00> : vector<128xf32>
    %227 = vector.multi_reduction <add>, %226, %cst_60 [0] : vector<8x128xf32> to vector<128xf32>
    %228 = vector.shape_cast %227 : vector<128xf32> to vector<1x128xf32>
    %229 = vector.extract_strided_slice %21 {offsets = [0, 768], sizes = [8, 128], strides = [1, 1]} : vector<8x1024xf32> to vector<8x128xf32>
    %230 = arith.mulf %204, %229 : vector<8x128xf32>
    %cst_61 = arith.constant dense<0.000000e+00> : vector<128xf32>
    %231 = vector.multi_reduction <add>, %230, %cst_61 [0] : vector<8x128xf32> to vector<128xf32>
    %232 = vector.shape_cast %231 : vector<128xf32> to vector<1x128xf32>
    %233 = vector.extract_strided_slice %21 {offsets = [0, 896], sizes = [8, 128], strides = [1, 1]} : vector<8x1024xf32> to vector<8x128xf32>
    %234 = arith.mulf %204, %233 : vector<8x128xf32>
    %cst_62 = arith.constant dense<0.000000e+00> : vector<128xf32>
    %235 = vector.multi_reduction <add>, %234, %cst_62 [0] : vector<8x128xf32> to vector<128xf32>
    %236 = vector.shape_cast %235 : vector<128xf32> to vector<1x128xf32>
    %237 = tpu.concatenate %208, %212, %216, %220, %224, %228, %232, %236 in 0 : vector<1x128xf32>, vector<1x128xf32>, vector<1x128xf32>, vector<1x128xf32>, vector<1x128xf32>, vector<1x128xf32>, vector<1x128xf32>, vector<1x128xf32> -> vector<8x128xf32>
    %cst_63 = arith.constant dense<0xFF800000> : vector<128xf32>
    %238 = vector.multi_reduction <maximumf>, %237, %cst_63 [0] : vector<8x128xf32> to vector<128xf32>
    %239 = vector.shape_cast %238 : vector<128xf32> to vector<1x128xf32>
    %240 = vector.broadcast %239 : vector<1x128xf32> to vector<8x128xf32>
    %241 = arith.subf %237, %240 : vector<8x128xf32>
    %242 = math.exp %241 : vector<8x128xf32>
    %cst_64 = arith.constant dense<0.000000e+00> : vector<128xf32>
    %243 = vector.multi_reduction <add>, %242, %cst_64 [0] : vector<8x128xf32> to vector<128xf32>
    %244 = vector.shape_cast %243 : vector<128xf32> to vector<1x128xf32>
    %245 = tpu.reciprocal %244 : vector<1x128xf32> -> vector<1x128xf32>
    %246 = vector.broadcast %245 : vector<1x128xf32> to vector<8x128xf32>
    %247 = arith.mulf %242, %246 : vector<8x128xf32>
    %248 = arith.addf %203, %247 : vector<8x128xf32>
    %249 = vector.extract_strided_slice %20 {offsets = [0, 640], sizes = [8, 128], strides = [1, 1]} : vector<8x1024xf32> to vector<8x128xf32>
    %250 = vector.extract_strided_slice %21 {offsets = [0, 0], sizes = [8, 128], strides = [1, 1]} : vector<8x1024xf32> to vector<8x128xf32>
    %251 = arith.mulf %249, %250 : vector<8x128xf32>
    %cst_65 = arith.constant dense<0.000000e+00> : vector<128xf32>
    %252 = vector.multi_reduction <add>, %251, %cst_65 [0] : vector<8x128xf32> to vector<128xf32>
    %253 = vector.shape_cast %252 : vector<128xf32> to vector<1x128xf32>
    %254 = vector.extract_strided_slice %21 {offsets = [0, 128], sizes = [8, 128], strides = [1, 1]} : vector<8x1024xf32> to vector<8x128xf32>
    %255 = arith.mulf %249, %254 : vector<8x128xf32>
    %cst_66 = arith.constant dense<0.000000e+00> : vector<128xf32>
    %256 = vector.multi_reduction <add>, %255, %cst_66 [0] : vector<8x128xf32> to vector<128xf32>
    %257 = vector.shape_cast %256 : vector<128xf32> to vector<1x128xf32>
    %258 = vector.extract_strided_slice %21 {offsets = [0, 256], sizes = [8, 128], strides = [1, 1]} : vector<8x1024xf32> to vector<8x128xf32>
    %259 = arith.mulf %249, %258 : vector<8x128xf32>
    %cst_67 = arith.constant dense<0.000000e+00> : vector<128xf32>
    %260 = vector.multi_reduction <add>, %259, %cst_67 [0] : vector<8x128xf32> to vector<128xf32>
    %261 = vector.shape_cast %260 : vector<128xf32> to vector<1x128xf32>
    %262 = vector.extract_strided_slice %21 {offsets = [0, 384], sizes = [8, 128], strides = [1, 1]} : vector<8x1024xf32> to vector<8x128xf32>
    %263 = arith.mulf %249, %262 : vector<8x128xf32>
    %cst_68 = arith.constant dense<0.000000e+00> : vector<128xf32>
    %264 = vector.multi_reduction <add>, %263, %cst_68 [0] : vector<8x128xf32> to vector<128xf32>
    %265 = vector.shape_cast %264 : vector<128xf32> to vector<1x128xf32>
    %266 = vector.extract_strided_slice %21 {offsets = [0, 512], sizes = [8, 128], strides = [1, 1]} : vector<8x1024xf32> to vector<8x128xf32>
    %267 = arith.mulf %249, %266 : vector<8x128xf32>
    %cst_69 = arith.constant dense<0.000000e+00> : vector<128xf32>
    %268 = vector.multi_reduction <add>, %267, %cst_69 [0] : vector<8x128xf32> to vector<128xf32>
    %269 = vector.shape_cast %268 : vector<128xf32> to vector<1x128xf32>
    %270 = vector.extract_strided_slice %21 {offsets = [0, 640], sizes = [8, 128], strides = [1, 1]} : vector<8x1024xf32> to vector<8x128xf32>
    %271 = arith.mulf %249, %270 : vector<8x128xf32>
    %cst_70 = arith.constant dense<0.000000e+00> : vector<128xf32>
    %272 = vector.multi_reduction <add>, %271, %cst_70 [0] : vector<8x128xf32> to vector<128xf32>
    %273 = vector.shape_cast %272 : vector<128xf32> to vector<1x128xf32>
    %274 = vector.extract_strided_slice %21 {offsets = [0, 768], sizes = [8, 128], strides = [1, 1]} : vector<8x1024xf32> to vector<8x128xf32>
    %275 = arith.mulf %249, %274 : vector<8x128xf32>
    %cst_71 = arith.constant dense<0.000000e+00> : vector<128xf32>
    %276 = vector.multi_reduction <add>, %275, %cst_71 [0] : vector<8x128xf32> to vector<128xf32>
    %277 = vector.shape_cast %276 : vector<128xf32> to vector<1x128xf32>
    %278 = vector.extract_strided_slice %21 {offsets = [0, 896], sizes = [8, 128], strides = [1, 1]} : vector<8x1024xf32> to vector<8x128xf32>
    %279 = arith.mulf %249, %278 : vector<8x128xf32>
    %cst_72 = arith.constant dense<0.000000e+00> : vector<128xf32>
    %280 = vector.multi_reduction <add>, %279, %cst_72 [0] : vector<8x128xf32> to vector<128xf32>
    %281 = vector.shape_cast %280 : vector<128xf32> to vector<1x128xf32>
    %282 = tpu.concatenate %253, %257, %261, %265, %269, %273, %277, %281 in 0 : vector<1x128xf32>, vector<1x128xf32>, vector<1x128xf32>, vector<1x128xf32>, vector<1x128xf32>, vector<1x128xf32>, vector<1x128xf32>, vector<1x128xf32> -> vector<8x128xf32>
    %cst_73 = arith.constant dense<0xFF800000> : vector<128xf32>
    %283 = vector.multi_reduction <maximumf>, %282, %cst_73 [0] : vector<8x128xf32> to vector<128xf32>
    %284 = vector.shape_cast %283 : vector<128xf32> to vector<1x128xf32>
    %285 = vector.broadcast %284 : vector<1x128xf32> to vector<8x128xf32>
    %286 = arith.subf %282, %285 : vector<8x128xf32>
    %287 = math.exp %286 : vector<8x128xf32>
    %cst_74 = arith.constant dense<0.000000e+00> : vector<128xf32>
    %288 = vector.multi_reduction <add>, %287, %cst_74 [0] : vector<8x128xf32> to vector<128xf32>
    %289 = vector.shape_cast %288 : vector<128xf32> to vector<1x128xf32>
    %290 = tpu.reciprocal %289 : vector<1x128xf32> -> vector<1x128xf32>
    %291 = vector.broadcast %290 : vector<1x128xf32> to vector<8x128xf32>
    %292 = arith.mulf %287, %291 : vector<8x128xf32>
    %293 = arith.addf %248, %292 : vector<8x128xf32>
    %294 = vector.extract_strided_slice %20 {offsets = [0, 768], sizes = [8, 128], strides = [1, 1]} : vector<8x1024xf32> to vector<8x128xf32>
    %295 = vector.extract_strided_slice %21 {offsets = [0, 0], sizes = [8, 128], strides = [1, 1]} : vector<8x1024xf32> to vector<8x128xf32>
    %296 = arith.mulf %294, %295 : vector<8x128xf32>
    %cst_75 = arith.constant dense<0.000000e+00> : vector<128xf32>
    %297 = vector.multi_reduction <add>, %296, %cst_75 [0] : vector<8x128xf32> to vector<128xf32>
    %298 = vector.shape_cast %297 : vector<128xf32> to vector<1x128xf32>
    %299 = vector.extract_strided_slice %21 {offsets = [0, 128], sizes = [8, 128], strides = [1, 1]} : vector<8x1024xf32> to vector<8x128xf32>
    %300 = arith.mulf %294, %299 : vector<8x128xf32>
    %cst_76 = arith.constant dense<0.000000e+00> : vector<128xf32>
    %301 = vector.multi_reduction <add>, %300, %cst_76 [0] : vector<8x128xf32> to vector<128xf32>
    %302 = vector.shape_cast %301 : vector<128xf32> to vector<1x128xf32>
    %303 = vector.extract_strided_slice %21 {offsets = [0, 256], sizes = [8, 128], strides = [1, 1]} : vector<8x1024xf32> to vector<8x128xf32>
    %304 = arith.mulf %294, %303 : vector<8x128xf32>
    %cst_77 = arith.constant dense<0.000000e+00> : vector<128xf32>
    %305 = vector.multi_reduction <add>, %304, %cst_77 [0] : vector<8x128xf32> to vector<128xf32>
    %306 = vector.shape_cast %305 : vector<128xf32> to vector<1x128xf32>
    %307 = vector.extract_strided_slice %21 {offsets = [0, 384], sizes = [8, 128], strides = [1, 1]} : vector<8x1024xf32> to vector<8x128xf32>
    %308 = arith.mulf %294, %307 : vector<8x128xf32>
    %cst_78 = arith.constant dense<0.000000e+00> : vector<128xf32>
    %309 = vector.multi_reduction <add>, %308, %cst_78 [0] : vector<8x128xf32> to vector<128xf32>
    %310 = vector.shape_cast %309 : vector<128xf32> to vector<1x128xf32>
    %311 = vector.extract_strided_slice %21 {offsets = [0, 512], sizes = [8, 128], strides = [1, 1]} : vector<8x1024xf32> to vector<8x128xf32>
    %312 = arith.mulf %294, %311 : vector<8x128xf32>
    %cst_79 = arith.constant dense<0.000000e+00> : vector<128xf32>
    %313 = vector.multi_reduction <add>, %312, %cst_79 [0] : vector<8x128xf32> to vector<128xf32>
    %314 = vector.shape_cast %313 : vector<128xf32> to vector<1x128xf32>
    %315 = vector.extract_strided_slice %21 {offsets = [0, 640], sizes = [8, 128], strides = [1, 1]} : vector<8x1024xf32> to vector<8x128xf32>
    %316 = arith.mulf %294, %315 : vector<8x128xf32>
    %cst_80 = arith.constant dense<0.000000e+00> : vector<128xf32>
    %317 = vector.multi_reduction <add>, %316, %cst_80 [0] : vector<8x128xf32> to vector<128xf32>
    %318 = vector.shape_cast %317 : vector<128xf32> to vector<1x128xf32>
    %319 = vector.extract_strided_slice %21 {offsets = [0, 768], sizes = [8, 128], strides = [1, 1]} : vector<8x1024xf32> to vector<8x128xf32>
    %320 = arith.mulf %294, %319 : vector<8x128xf32>
    %cst_81 = arith.constant dense<0.000000e+00> : vector<128xf32>
    %321 = vector.multi_reduction <add>, %320, %cst_81 [0] : vector<8x128xf32> to vector<128xf32>
    %322 = vector.shape_cast %321 : vector<128xf32> to vector<1x128xf32>
    %323 = vector.extract_strided_slice %21 {offsets = [0, 896], sizes = [8, 128], strides = [1, 1]} : vector<8x1024xf32> to vector<8x128xf32>
    %324 = arith.mulf %294, %323 : vector<8x128xf32>
    %cst_82 = arith.constant dense<0.000000e+00> : vector<128xf32>
    %325 = vector.multi_reduction <add>, %324, %cst_82 [0] : vector<8x128xf32> to vector<128xf32>
    %326 = vector.shape_cast %325 : vector<128xf32> to vector<1x128xf32>
    %327 = tpu.concatenate %298, %302, %306, %310, %314, %318, %322, %326 in 0 : vector<1x128xf32>, vector<1x128xf32>, vector<1x128xf32>, vector<1x128xf32>, vector<1x128xf32>, vector<1x128xf32>, vector<1x128xf32>, vector<1x128xf32> -> vector<8x128xf32>
    %cst_83 = arith.constant dense<0xFF800000> : vector<128xf32>
    %328 = vector.multi_reduction <maximumf>, %327, %cst_83 [0] : vector<8x128xf32> to vector<128xf32>
    %329 = vector.shape_cast %328 : vector<128xf32> to vector<1x128xf32>
    %330 = vector.broadcast %329 : vector<1x128xf32> to vector<8x128xf32>
    %331 = arith.subf %327, %330 : vector<8x128xf32>
    %332 = math.exp %331 : vector<8x128xf32>
    %cst_84 = arith.constant dense<0.000000e+00> : vector<128xf32>
    %333 = vector.multi_reduction <add>, %332, %cst_84 [0] : vector<8x128xf32> to vector<128xf32>
    %334 = vector.shape_cast %333 : vector<128xf32> to vector<1x128xf32>
    %335 = tpu.reciprocal %334 : vector<1x128xf32> -> vector<1x128xf32>
    %336 = vector.broadcast %335 : vector<1x128xf32> to vector<8x128xf32>
    %337 = arith.mulf %332, %336 : vector<8x128xf32>
    %338 = arith.addf %293, %337 : vector<8x128xf32>
    %339 = vector.extract_strided_slice %20 {offsets = [0, 896], sizes = [8, 128], strides = [1, 1]} : vector<8x1024xf32> to vector<8x128xf32>
    %340 = vector.extract_strided_slice %21 {offsets = [0, 0], sizes = [8, 128], strides = [1, 1]} : vector<8x1024xf32> to vector<8x128xf32>
    %341 = arith.mulf %339, %340 : vector<8x128xf32>
    %cst_85 = arith.constant dense<0.000000e+00> : vector<128xf32>
    %342 = vector.multi_reduction <add>, %341, %cst_85 [0] : vector<8x128xf32> to vector<128xf32>
    %343 = vector.shape_cast %342 : vector<128xf32> to vector<1x128xf32>
    %344 = vector.extract_strided_slice %21 {offsets = [0, 128], sizes = [8, 128], strides = [1, 1]} : vector<8x1024xf32> to vector<8x128xf32>
    %345 = arith.mulf %339, %344 : vector<8x128xf32>
    %cst_86 = arith.constant dense<0.000000e+00> : vector<128xf32>
    %346 = vector.multi_reduction <add>, %345, %cst_86 [0] : vector<8x128xf32> to vector<128xf32>
    %347 = vector.shape_cast %346 : vector<128xf32> to vector<1x128xf32>
    %348 = vector.extract_strided_slice %21 {offsets = [0, 256], sizes = [8, 128], strides = [1, 1]} : vector<8x1024xf32> to vector<8x128xf32>
    %349 = arith.mulf %339, %348 : vector<8x128xf32>
    %cst_87 = arith.constant dense<0.000000e+00> : vector<128xf32>
    %350 = vector.multi_reduction <add>, %349, %cst_87 [0] : vector<8x128xf32> to vector<128xf32>
    %351 = vector.shape_cast %350 : vector<128xf32> to vector<1x128xf32>
    %352 = vector.extract_strided_slice %21 {offsets = [0, 384], sizes = [8, 128], strides = [1, 1]} : vector<8x1024xf32> to vector<8x128xf32>
    %353 = arith.mulf %339, %352 : vector<8x128xf32>
    %cst_88 = arith.constant dense<0.000000e+00> : vector<128xf32>
    %354 = vector.multi_reduction <add>, %353, %cst_88 [0] : vector<8x128xf32> to vector<128xf32>
    %355 = vector.shape_cast %354 : vector<128xf32> to vector<1x128xf32>
    %356 = vector.extract_strided_slice %21 {offsets = [0, 512], sizes = [8, 128], strides = [1, 1]} : vector<8x1024xf32> to vector<8x128xf32>
    %357 = arith.mulf %339, %356 : vector<8x128xf32>
    %cst_89 = arith.constant dense<0.000000e+00> : vector<128xf32>
    %358 = vector.multi_reduction <add>, %357, %cst_89 [0] : vector<8x128xf32> to vector<128xf32>
    %359 = vector.shape_cast %358 : vector<128xf32> to vector<1x128xf32>
    %360 = vector.extract_strided_slice %21 {offsets = [0, 640], sizes = [8, 128], strides = [1, 1]} : vector<8x1024xf32> to vector<8x128xf32>
    %361 = arith.mulf %339, %360 : vector<8x128xf32>
    %cst_90 = arith.constant dense<0.000000e+00> : vector<128xf32>
    %362 = vector.multi_reduction <add>, %361, %cst_90 [0] : vector<8x128xf32> to vector<128xf32>
    %363 = vector.shape_cast %362 : vector<128xf32> to vector<1x128xf32>
    %364 = vector.extract_strided_slice %21 {offsets = [0, 768], sizes = [8, 128], strides = [1, 1]} : vector<8x1024xf32> to vector<8x128xf32>
    %365 = arith.mulf %339, %364 : vector<8x128xf32>
    %cst_91 = arith.constant dense<0.000000e+00> : vector<128xf32>
    %366 = vector.multi_reduction <add>, %365, %cst_91 [0] : vector<8x128xf32> to vector<128xf32>
    %367 = vector.shape_cast %366 : vector<128xf32> to vector<1x128xf32>
    %368 = vector.extract_strided_slice %21 {offsets = [0, 896], sizes = [8, 128], strides = [1, 1]} : vector<8x1024xf32> to vector<8x128xf32>
    %369 = arith.mulf %339, %368 : vector<8x128xf32>
    %cst_92 = arith.constant dense<0.000000e+00> : vector<128xf32>
    %370 = vector.multi_reduction <add>, %369, %cst_92 [0] : vector<8x128xf32> to vector<128xf32>
    %371 = vector.shape_cast %370 : vector<128xf32> to vector<1x128xf32>
    %372 = tpu.concatenate %343, %347, %351, %355, %359, %363, %367, %371 in 0 : vector<1x128xf32>, vector<1x128xf32>, vector<1x128xf32>, vector<1x128xf32>, vector<1x128xf32>, vector<1x128xf32>, vector<1x128xf32>, vector<1x128xf32> -> vector<8x128xf32>
    %cst_93 = arith.constant dense<0xFF800000> : vector<128xf32>
    %373 = vector.multi_reduction <maximumf>, %372, %cst_93 [0] : vector<8x128xf32> to vector<128xf32>
    %374 = vector.shape_cast %373 : vector<128xf32> to vector<1x128xf32>
    %375 = vector.broadcast %374 : vector<1x128xf32> to vector<8x128xf32>
    %376 = arith.subf %372, %375 : vector<8x128xf32>
    %377 = math.exp %376 : vector<8x128xf32>
    %cst_94 = arith.constant dense<0.000000e+00> : vector<128xf32>
    %378 = vector.multi_reduction <add>, %377, %cst_94 [0] : vector<8x128xf32> to vector<128xf32>
    %379 = vector.shape_cast %378 : vector<128xf32> to vector<1x128xf32>
    %380 = tpu.reciprocal %379 : vector<1x128xf32> -> vector<1x128xf32>
    %381 = vector.broadcast %380 : vector<1x128xf32> to vector<8x128xf32>
    %382 = arith.mulf %377, %381 : vector<8x128xf32>
    %383 = arith.addf %338, %382 : vector<8x128xf32>
    %cst_95 = arith.constant 1.250000e-01 : f32
    %384 = vector.broadcast %cst_95 : f32 to vector<8x128xf32>
    %385 = arith.mulf %383, %384 : vector<8x128xf32>
    %cst_96 = arith.constant 0.000000e+00 : f32
    %386 = vector.broadcast %cst_96 : f32 to vector<8x128xf32>
    %387 = vector.extract_strided_slice %22 {offsets = [0, 0], sizes = [8, 128], strides = [1, 1]} : vector<8x1024xf32> to vector<8x128xf32>
    %388 = vector.extract_strided_slice %385 {offsets = [0, 0], sizes = [1, 128], strides = [1, 1]} : vector<8x128xf32> to vector<1x128xf32>
    %389 = vector.broadcast %388 : vector<1x128xf32> to vector<8x128xf32>
    %390 = arith.mulf %389, %387 : vector<8x128xf32>
    %391 = arith.addf %386, %390 : vector<8x128xf32>
    %392 = vector.extract_strided_slice %22 {offsets = [0, 128], sizes = [8, 128], strides = [1, 1]} : vector<8x1024xf32> to vector<8x128xf32>
    %393 = vector.extract_strided_slice %385 {offsets = [1, 0], sizes = [1, 128], strides = [1, 1]} : vector<8x128xf32> to vector<1x128xf32>
    %394 = vector.broadcast %393 : vector<1x128xf32> to vector<8x128xf32>
    %395 = arith.mulf %394, %392 : vector<8x128xf32>
    %396 = arith.addf %391, %395 : vector<8x128xf32>
    %397 = vector.extract_strided_slice %22 {offsets = [0, 256], sizes = [8, 128], strides = [1, 1]} : vector<8x1024xf32> to vector<8x128xf32>
    %398 = vector.extract_strided_slice %385 {offsets = [2, 0], sizes = [1, 128], strides = [1, 1]} : vector<8x128xf32> to vector<1x128xf32>
    %399 = vector.broadcast %398 : vector<1x128xf32> to vector<8x128xf32>
    %400 = arith.mulf %399, %397 : vector<8x128xf32>
    %401 = arith.addf %396, %400 : vector<8x128xf32>
    %402 = vector.extract_strided_slice %22 {offsets = [0, 384], sizes = [8, 128], strides = [1, 1]} : vector<8x1024xf32> to vector<8x128xf32>
    %403 = vector.extract_strided_slice %385 {offsets = [3, 0], sizes = [1, 128], strides = [1, 1]} : vector<8x128xf32> to vector<1x128xf32>
    %404 = vector.broadcast %403 : vector<1x128xf32> to vector<8x128xf32>
    %405 = arith.mulf %404, %402 : vector<8x128xf32>
    %406 = arith.addf %401, %405 : vector<8x128xf32>
    %407 = vector.extract_strided_slice %22 {offsets = [0, 512], sizes = [8, 128], strides = [1, 1]} : vector<8x1024xf32> to vector<8x128xf32>
    %408 = vector.extract_strided_slice %385 {offsets = [4, 0], sizes = [1, 128], strides = [1, 1]} : vector<8x128xf32> to vector<1x128xf32>
    %409 = vector.broadcast %408 : vector<1x128xf32> to vector<8x128xf32>
    %410 = arith.mulf %409, %407 : vector<8x128xf32>
    %411 = arith.addf %406, %410 : vector<8x128xf32>
    %412 = vector.extract_strided_slice %22 {offsets = [0, 640], sizes = [8, 128], strides = [1, 1]} : vector<8x1024xf32> to vector<8x128xf32>
    %413 = vector.extract_strided_slice %385 {offsets = [5, 0], sizes = [1, 128], strides = [1, 1]} : vector<8x128xf32> to vector<1x128xf32>
    %414 = vector.broadcast %413 : vector<1x128xf32> to vector<8x128xf32>
    %415 = arith.mulf %414, %412 : vector<8x128xf32>
    %416 = arith.addf %411, %415 : vector<8x128xf32>
    %417 = vector.extract_strided_slice %22 {offsets = [0, 768], sizes = [8, 128], strides = [1, 1]} : vector<8x1024xf32> to vector<8x128xf32>
    %418 = vector.extract_strided_slice %385 {offsets = [6, 0], sizes = [1, 128], strides = [1, 1]} : vector<8x128xf32> to vector<1x128xf32>
    %419 = vector.broadcast %418 : vector<1x128xf32> to vector<8x128xf32>
    %420 = arith.mulf %419, %417 : vector<8x128xf32>
    %421 = arith.addf %416, %420 : vector<8x128xf32>
    %422 = vector.extract_strided_slice %22 {offsets = [0, 896], sizes = [8, 128], strides = [1, 1]} : vector<8x1024xf32> to vector<8x128xf32>
    %423 = vector.extract_strided_slice %385 {offsets = [7, 0], sizes = [1, 128], strides = [1, 1]} : vector<8x128xf32> to vector<1x128xf32>
    %424 = vector.broadcast %423 : vector<1x128xf32> to vector<8x128xf32>
    %425 = arith.mulf %424, %422 : vector<8x128xf32>
    %426 = arith.addf %421, %425 : vector<8x128xf32>
    %c0_97 = arith.constant 0 : index
    %c0_98 = arith.constant 0 : index
    %427 = vector.load %arg6[%c0_97, %c0_98] : memref<8x8xf32, #tpu.memory_space<vmem>>, vector<8x8xf32>
    %cst_99 = arith.constant dense<0.000000e+00> : vector<8x128xf32>
    %428 = tpu.matmul %427, %426, %cst_99 {dimension_numbers = #tpu.dot_dimension_numbers<[1], [0], [0], [1], [0, 0, 1, 1], [], []>} : vector<8x8xf32>, vector<8x128xf32>, vector<8x128xf32> -> vector<8x128xf32>
    %c0_100 = arith.constant 0 : index
    %c0_101 = arith.constant 0 : index
    %429 = vector.load %arg7[%c0_100, %c0_101] : memref<8x1xf32, #tpu.memory_space<vmem>>, vector<8x1xf32>
    %430 = vector.broadcast %429 : vector<8x1xf32> to vector<8x128xf32>
    %431 = arith.addf %428, %430 : vector<8x128xf32>
    %c0_102 = arith.constant 0 : index
    %c0_103 = arith.constant 0 : index
    %432 = vector.load %arg8[%c0_102, %c0_103] : memref<8x128xf32, #tpu.memory_space<vmem>>, vector<8x128xf32>
    tpu.vector_store %arg8[%c0_102, %c0_103], %431 {strides = array<i32>} : memref<8x128xf32, #tpu.memory_space<vmem>>, vector<8x128xf32>,
    return
  }
  func.func @transform_0(%arg0: i32) -> (i32, i32, i32) {
    %c0_i32 = arith.constant 0 : i32
    %c0_i32_0 = arith.constant 0 : i32
    %c0_i32_1 = arith.constant 0 : i32
    return %arg0, %c0_i32, %c0_i32_0 : i32, i32, i32
  }
  func.func @transform_1(%arg0: i32) -> (i32, i32) {
    %c0_i32 = arith.constant 0 : i32
    %c0_i32_0 = arith.constant 0 : i32
    %c0_i32_1 = arith.constant 0 : i32
    return %c0_i32, %c0_i32_0 : i32, i32
  }
  func.func @transform_2(%arg0: i32) -> (i32, i32) {
    %c0_i32 = arith.constant 0 : i32
    %c0_i32_0 = arith.constant 0 : i32
    %c0_i32_1 = arith.constant 0 : i32
    return %c0_i32, %c0_i32_0 : i32, i32
  }
  func.func @transform_3(%arg0: i32) -> (i32, i32) {
    %c0_i32 = arith.constant 0 : i32
    %c0_i32_0 = arith.constant 0 : i32
    %c0_i32_1 = arith.constant 0 : i32
    return %c0_i32, %c0_i32_0 : i32, i32
  }
  func.func @transform_4(%arg0: i32) -> (i32, i32) {
    %c0_i32 = arith.constant 0 : i32
    %c0_i32_0 = arith.constant 0 : i32
    %c0_i32_1 = arith.constant 0 : i32
    return %c0_i32, %c0_i32_0 : i32, i32
  }
  func.func @transform_5(%arg0: i32) -> (i32, i32) {
    %c0_i32 = arith.constant 0 : i32
    %c0_i32_0 = arith.constant 0 : i32
    %c0_i32_1 = arith.constant 0 : i32
    return %c0_i32, %c0_i32_0 : i32, i32
  }
  func.func @transform_6(%arg0: i32) -> (i32, i32) {
    %c0_i32 = arith.constant 0 : i32
    %c0_i32_0 = arith.constant 0 : i32
    %c0_i32_1 = arith.constant 0 : i32
    return %c0_i32, %c0_i32_0 : i32, i32
  }
  func.func @transform_7(%arg0: i32) -> (i32, i32) {
    %c0_i32 = arith.constant 0 : i32
    %c0_i32_0 = arith.constant 0 : i32
    return %c0_i32, %arg0 : i32, i32
  }
}

</mosaic_0001>

<llo_original>
// kernel: tpu_custom_call.1
$region0: #{tpu_custom_call.1}
  #allocation0 [shape = 'u32[]', space=smem, size = 0x4, offset = 0x4, fixed_abs, tag = 'smem constant byte address 0x4 - core index']
  #allocation1 [shape = 'u32[144,128]{1,0:T(1,128)}', space=vmem, size = 0x12000, scoped, tag = 'internal scratch']
  %s0 = inlined_call_operand.hbm [shape: f32[2,16,1024], index: 0, kind: input, shape index: {}]
  %s1 = inlined_call_operand.vmem [shape: f32[8,16], index: 1, kind: input, shape index: {}]
  %s2 = inlined_call_operand.vmem [shape: f32[8,1], index: 2, kind: input, shape index: {}]
  %s3 = inlined_call_operand.vmem [shape: f32[24,8], index: 3, kind: input, shape index: {}]
  %s4 = inlined_call_operand.vmem [shape: f32[24,1], index: 4, kind: input, shape index: {}]
  %s5 = inlined_call_operand.vmem [shape: f32[8,8], index: 5, kind: input, shape index: {}]
  %s6 = inlined_call_operand.vmem [shape: f32[8,1], index: 6, kind: input, shape index: {}]
  %s7 = inlined_call_operand.hbm [shape: f32[8,256], index: 7, kind: output, shape index: {}]
  %s8 = sld [smem:[#allocation0]]
  $region65: #{tpu_custom_call.1} parent=0
    _
  %s10 = ssub.s32 1, %s8
  %s11 = scalar_select 0, %s10, %s8
  $region1: #{tpu_custom_call.1} parent=0
    #allocation2 [shape = 'u8[131072]{0}', space=vmem, size = 0x20000, scoped, tag = 'input window, operand 0']
    #allocation3 [shape = 's32[2]{0}', space=sflag, size = 0x8, scoped, tag = 'scoped memory for tpu_custom_call.1']
    #allocation4 [shape = 's32[2]{0}', space=sflag, size = 0x8, scoped, tag = 'scoped memory for tpu_custom_call.1']
    #allocation5 [shape = 'u8[8192]{0}', space=vmem, size = 0x2000, scoped, tag = 'output window, operand 0']
    %12 = vsyncpa [#allocation3], 0
    %s13 = scalar_lea.sflag [#allocation3], 1
    %14 = vsyncpa %s13, 0
    %15 = vsyncpa [#allocation4], 0
    %s16 = scalar_lea.sflag [#allocation4], 1
    %17 = vsyncpa %s16, 0
    loop: start=0, step=1, limit=4
    $region2: #{tpu_custom_call.1} parent=1 // loop_pre_header
      _
    $region3: #{tpu_custom_call.1} parent=1 // loop_header
      %s19 = sphi 0, %s23
      %p20 = scmp.ge.s32.totalorder %s19, 4
      %s29 = sphi 0, %s31
      %s32 = sphi 0, %s29
      %s33 = sphi 0, %s32
      %s49 = sphi 0, %s33
      %s53 = sphi 0, %s53
      %s55 = sphi 0, %s53
      %s56 = sphi 0, %s55
      %s70 = sphi 0, %s56
      %s74 = sphi 0, %s74
      %s76 = sphi 0, %s74
      %s77 = sphi 0, %s76
      %s91 = sphi 0, %s77
      %s95 = sphi 0, %s95
      %s97 = sphi 0, %s95
      %s98 = sphi 0, %s97
      %s112 = sphi 0, %s98
      %s116 = sphi 0, %s116
      %s118 = sphi 0, %s116
      %s119 = sphi 0, %s118
      %s133 = sphi 0, %s119
      %s137 = sphi 0, %s137
      %s139 = sphi 0, %s137
      %s140 = sphi 0, %s139
      %s154 = sphi 0, %s140
      %s158 = sphi 0, %s158
      %s160 = sphi 0, %s158
      %s161 = sphi 0, %s160
      %s175 = sphi 0, %s161
      %s181 = sphi 0, %s183
      %s184 = sphi 0, %s181
      %s185 = sphi 0, %s184
      %s201 = sphi 0, %s185
    $region4: #{tpu_custom_call.1} parent=1 // loop_header_branch
      %22 = sbr.rel (%p20) target = $region8
    $region5: #{tpu_custom_call.1} parent=1 // loop_body
      %s24 = ssub.s32 %s19, 1
      %s25 = ssub.s32 %s19, 2
      %s26 = sadd.s32 %s19, 1
      %s27 = ssub.s32 %s19, %s26
      %p28 = scmp.eq.s32.totalorder %s27, 0
      %s30 = sadd.s32 %s29, 1
      %s31 = scalar_select %p28, %s29, %s30
      %p34 = pneg %p28
      %p35 = scmp.eq.s32.totalorder %s19, 1
      %p36 = por %p34, %p35
      %p37 = scmp.ne.s32.totalorder %s29, %s32
      %p38 = scmp.eq.s32.totalorder %s19, 0
      %p39 = por %p37, %p38
      %p40 = scmp.ne.s32.totalorder %s29, %s32
      %p41 = scmp.eq.s32.totalorder %s24, 1
      %p42 = por %p40, %p41
      %p43 = scmp.ne.s32.totalorder %s32, %s33
      %p44 = scmp.eq.s32.totalorder %s24, 0
      %p45 = por %p43, %p44
      %p46 = scmp.ne.s32.totalorder %s32, %s33
      %p47 = scmp.eq.s32.totalorder %s25, 1
      %p48 = por %p46, %p47
      %p50 = scmp.ne.s32.totalorder %s33, %s49
      %p51 = scmp.eq.s32.totalorder %s25, 0
      %p52 = por %p50, %p51
      %s54 = sadd.s32 %s53, 1
      %p57 = scmp.eq.s32.totalorder %s19, 1
      %p58 = scmp.ne.s32.totalorder %s53, %s55
      %p59 = scmp.eq.s32.totalorder %s19, 0
      %p60 = por %p58, %p59
      %p61 = scmp.ne.s32.totalorder %s53, %s55
      %p62 = scmp.eq.s32.totalorder %s24, 1
      %p63 = por %p61, %p62
      %p64 = scmp.ne.s32.totalorder %s55, %s56
      %p65 = scmp.eq.s32.totalorder %s24, 0
      %p66 = por %p64, %p65
      %p67 = scmp.ne.s32.totalorder %s55, %s56
      %p68 = scmp.eq.s32.totalorder %s25, 1
      %p69 = por %p67, %p68
      %p71 = scmp.ne.s32.totalorder %s56, %s70
      %p72 = scmp.eq.s32.totalorder %s25, 0
      %p73 = por %p71, %p72
      %s75 = sadd.s32 %s74, 1
      %p78 = scmp.eq.s32.totalorder %s19, 1
      %p79 = scmp.ne.s32.totalorder %s74, %s76
      %p80 = scmp.eq.s32.totalorder %s19, 0
      %p81 = por %p79, %p80
      %p82 = scmp.ne.s32.totalorder %s74, %s76
      %p83 = scmp.eq.s32.totalorder %s24, 1
      %p84 = por %p82, %p83
      %p85 = scmp.ne.s32.totalorder %s76, %s77
      %p86 = scmp.eq.s32.totalorder %s24, 0
      %p87 = por %p85, %p86
      %p88 = scmp.ne.s32.totalorder %s76, %s77
      %p89 = scmp.eq.s32.totalorder %s25, 1
      %p90 = por %p88, %p89
      %p92 = scmp.ne.s32.totalorder %s77, %s91
      %p93 = scmp.eq.s32.totalorder %s25, 0
      %p94 = por %p92, %p93
      %s96 = sadd.s32 %s95, 1
      %p99 = scmp.eq.s32.totalorder %s19, 1
      %p100 = scmp.ne.s32.totalorder %s95, %s97
      %p101 = scmp.eq.s32.totalorder %s19, 0
      %p102 = por %p100, %p101
      %p103 = scmp.ne.s32.totalorder %s95, %s97
      %p104 = scmp.eq.s32.totalorder %s24, 1
      %p105 = por %p103, %p104
      %p106 = scmp.ne.s32.totalorder %s97, %s98
      %p107 = scmp.eq.s32.totalorder %s24, 0
      %p108 = por %p106, %p107
      %p109 = scmp.ne.s32.totalorder %s97, %s98
      %p110 = scmp.eq.s32.totalorder %s25, 1
      %p111 = por %p109, %p110
      %p113 = scmp.ne.s32.totalorder %s98, %s112
      %p114 = scmp.eq.s32.totalorder %s25, 0
      %p115 = por %p113, %p114
      %s117 = sadd.s32 %s116, 1
      %p120 = scmp.eq.s32.totalorder %s19, 1
      %p121 = scmp.ne.s32.totalorder %s116, %s118
      %p122 = scmp.eq.s32.totalorder %s19, 0
      %p123 = por %p121, %p122
      %p124 = scmp.ne.s32.totalorder %s116, %s118
      %p125 = scmp.eq.s32.totalorder %s24, 1
      %p126 = por %p124, %p125
      %p127 = scmp.ne.s32.totalorder %s118, %s119
      %p128 = scmp.eq.s32.totalorder %s24, 0
      %p129 = por %p127, %p128
      %p130 = scmp.ne.s32.totalorder %s118, %s119
      %p131 = scmp.eq.s32.totalorder %s25, 1
      %p132 = por %p130, %p131
      %p134 = scmp.ne.s32.totalorder %s119, %s133
      %p135 = scmp.eq.s32.totalorder %s25, 0
      %p136 = por %p134, %p135
      %s138 = sadd.s32 %s137, 1
      %p141 = scmp.eq.s32.totalorder %s19, 1
      %p142 = scmp.ne.s32.totalorder %s137, %s139
      %p143 = scmp.eq.s32.totalorder %s19, 0
      %p144 = por %p142, %p143
      %p145 = scmp.ne.s32.totalorder %s137, %s139
      %p146 = scmp.eq.s32.totalorder %s24, 1
      %p147 = por %p145, %p146
      %p148 = scmp.ne.s32.totalorder %s139, %s140
      %p149 = scmp.eq.s32.totalorder %s24, 0
      %p150 = por %p148, %p149
      %p151 = scmp.ne.s32.totalorder %s139, %s140
      %p152 = scmp.eq.s32.totalorder %s25, 1
      %p153 = por %p151, %p152
      %p155 = scmp.ne.s32.totalorder %s140, %s154
      %p156 = scmp.eq.s32.totalorder %s25, 0
      %p157 = por %p155, %p156
      %s159 = sadd.s32 %s158, 1
      %p162 = scmp.eq.s32.totalorder %s19, 1
      %p163 = scmp.ne.s32.totalorder %s158, %s160
      %p164 = scmp.eq.s32.totalorder %s19, 0
      %p165 = por %p163, %p164
      %p166 = scmp.ne.s32.totalorder %s158, %s160
      %p167 = scmp.eq.s32.totalorder %s24, 1
      %p168 = por %p166, %p167
      %p169 = scmp.ne.s32.totalorder %s160, %s161
      %p170 = scmp.eq.s32.totalorder %s24, 0
      %p171 = por %p169, %p170
      %p172 = scmp.ne.s32.totalorder %s160, %s161
      %p173 = scmp.eq.s32.totalorder %s25, 1
      %p174 = por %p172, %p173
      %p176 = scmp.ne.s32.totalorder %s161, %s175
      %p177 = scmp.eq.s32.totalorder %s25, 0
      %p178 = por %p176, %p177
      %s179 = ssub.s32 %s19, %s26
      %p180 = scmp.eq.s32.totalorder %s179, 0
      %s182 = sadd.s32 %s181, 1
      %s183 = scalar_select %p180, %s181, %s182
      %p186 = pneg %p180
      %p187 = scmp.eq.s32.totalorder %s19, 1
      %p188 = por %p186, %p187
      %p189 = scmp.ne.s32.totalorder %s181, %s184
      %p190 = scmp.eq.s32.totalorder %s19, 0
      %p191 = por %p189, %p190
      %p192 = scmp.ne.s32.totalorder %s181, %s184
      %p193 = scmp.eq.s32.totalorder %s24, 1
      %p194 = por %p192, %p193
      %p195 = scmp.ne.s32.totalorder %s184, %s185
      %p196 = scmp.eq.s32.totalorder %s24, 0
      %p197 = por %p195, %p196
      %p198 = scmp.ne.s32.totalorder %s184, %s185
      %p199 = scmp.eq.s32.totalorder %s25, 1
      %p200 = por %p198, %p199
      %p202 = scmp.ne.s32.totalorder %s185, %s201
      %p203 = scmp.eq.s32.totalorder %s25, 0
      %p204 = por %p202, %p203
      %p205 = scmp.le.s32.totalorder 1, %s19
      %p206 = scmp.lt.s32.totalorder %s19, 3
      %p207 = pnand %p205, %p206
      %p208 = pneg %p207
      // Predicated region
      $region9: #{tpu_custom_call.1} parent=5 // pred_check
        _
      $region10: #{tpu_custom_call.1} parent=5 // pred_check_branch
        %210 = sbr.rel (%p207) target = $region12
      $region11: #{tpu_custom_call.1} parent=5 // pred_region
        %s211 = ssub.s32 %s19, 1
        // Predicated region
        $region13: #{tpu_custom_call.1} parent=11 // pred_check
          %p212 = pneg %p66
        $region14: #{tpu_custom_call.1} parent=11 // pred_check_branch
          %214 = sbr.rel (%p212) target = $region16
        $region15: #{tpu_custom_call.1} parent=11 // pred_region
          _
        $region16: #{tpu_custom_call.1} parent=11 // pred_fallthru
          _
        // Predicated region
        $region17: #{tpu_custom_call.1} parent=11 // pred_check
          %p215 = pneg %p87
        $region18: #{tpu_custom_call.1} parent=11 // pred_check_branch
          %217 = sbr.rel (%p215) target = $region20
        $region19: #{tpu_custom_call.1} parent=11 // pred_region
          _
        $region20: #{tpu_custom_call.1} parent=11 // pred_fallthru
          _
        // Predicated region
        $region21: #{tpu_custom_call.1} parent=11 // pred_check
          %p218 = pneg %p108
        $region22: #{tpu_custom_call.1} parent=11 // pred_check_branch
          %220 = sbr.rel (%p218) target = $region24
        $region23: #{tpu_custom_call.1} parent=11 // pred_region
          _
        $region24: #{tpu_custom_call.1} parent=11 // pred_fallthru
          _
        // Predicated region
        $region25: #{tpu_custom_call.1} parent=11 // pred_check
          %p221 = pneg %p129
        $region26: #{tpu_custom_call.1} parent=11 // pred_check_branch
          %223 = sbr.rel (%p221) target = $region28
        $region27: #{tpu_custom_call.1} parent=11 // pred_region
          _
        $region28: #{tpu_custom_call.1} parent=11 // pred_fallthru
          _
        // Predicated region
        $region29: #{tpu_custom_call.1} parent=11 // pred_check
          %p224 = pneg %p150
        $region30: #{tpu_custom_call.1} parent=11 // pred_check_branch
          %226 = sbr.rel (%p224) target = $region32
        $region31: #{tpu_custom_call.1} parent=11 // pred_region
          _
        $region32: #{tpu_custom_call.1} parent=11 // pred_fallthru
          _
        // Predicated region
        $region33: #{tpu_custom_call.1} parent=11 // pred_check
          %p227 = pneg %p171
        $region34: #{tpu_custom_call.1} parent=11 // pred_check_branch
          %229 = sbr.rel (%p227) target = $region36
        $region35: #{tpu_custom_call.1} parent=11 // pred_region
          _
        $region36: #{tpu_custom_call.1} parent=11 // pred_fallthru
          _
      $region12: #{tpu_custom_call.1} parent=5 // pred_fallthru
        _
      %p230 = scmp.lt.s32.totalorder %s19, 2
      // Predicated region
      $region37: #{tpu_custom_call.1} parent=5 // pred_check
        %p231 = pneg %p230
      $region38: #{tpu_custom_call.1} parent=5 // pred_check_branch
        %233 = sbr.rel (%p231) target = $region40
      $region39: #{tpu_custom_call.1} parent=5 // pred_region
        // Predicated region
        $region41: #{tpu_custom_call.1} parent=39 // pred_check
          %p234 = pneg %p39
        $region42: #{tpu_custom_call.1} parent=39 // pred_check_branch
          %236 = sbr.rel (%p234) target = $region44
        $region43: #{tpu_custom_call.1} parent=39 // pred_region
          %s237 = sand.u32 %s29, 1
          %s238 = scalar_lea.sflag [#allocation3], %s237
          %s239 = sand.u32 %s29, 1
          %s240 = smul.addr %s239, 128
          %s241 = scalar_lea.vmem [#allocation2], %s240
          %s243 = ssub.s32 2048, 2048
          %244 = vsyncadd %s238, %s243
          %s245 = smul.addr %s19, 16
          %s246 = smul.addr %s245, 128
          %s247 = scalar_lea.hbm %s0, %s246
          %s248 = sshll.u32 %s241, 4
          %s249 = int_to_ptr.vmem [resolvable:$true] %s248
          %254 = dma.hbm_to_vmem [thread:$0]  %s247, 2048, %s249, %s238, 1024, 1024, 64
        $region44: #{tpu_custom_call.1} parent=39 // pred_fallthru
          _
      $region40: #{tpu_custom_call.1} parent=5 // pred_fallthru
        _
      %p255 = scmp.le.s32.totalorder 1, %s19
      %p256 = scmp.lt.s32.totalorder %s19, 3
      %p257 = pnand %p255, %p256
      %p258 = pneg %p257
      // Predicated region
      $region45: #{tpu_custom_call.1} parent=5 // pred_check
        _
      $region46: #{tpu_custom_call.1} parent=5 // pred_check_branch
        %260 = sbr.rel (%p257) target = $region48
      $region47: #{tpu_custom_call.1} parent=5 // pred_region
        %s261 = ssub.s32 %s19, 1
        %s262 = sand.u32 %s32, 1
        %s263 = scalar_lea.sflag [#allocation3], %s262
        %s264 = sand.u32 %s32, 1
        %s265 = smul.addr %s264, 128
        %s266 = scalar_lea.vmem [#allocation2], %s265
        // Predicated region
        $region49: #{tpu_custom_call.1} parent=47 // pred_check
          %p267 = pneg %p45
        $region50: #{tpu_custom_call.1} parent=47 // pred_check_branch
          %269 = sbr.rel (%p267) target = $region52
        $region51: #{tpu_custom_call.1} parent=47 // pred_region
          %270 = dma.done %s263, 2048
        $region52: #{tpu_custom_call.1} parent=47 // pred_fallthru
          _
        %s271 = sand.u32 %s32, 1
        %s272 = scalar_lea.sflag [#allocation3], %s271
        %s273 = sand.u32 %s32, 1
        %s274 = smul.addr %s273, 128
        %s275 = scalar_lea.vmem [#allocation2], %s274
        %p276 = pneg %p45
        %p277 = pneg %p42
        %p278 = pneg %p66
        %p279 = pneg %p63
        %p280 = pneg %p87
        %p281 = pneg %p84
        %p282 = pneg %p108
        %p283 = pneg %p105
        %p284 = pneg %p129
        %p285 = pneg %p126
        %p286 = pneg %p150
        %p287 = pneg %p147
        %p288 = pneg %p171
        %p289 = pneg %p168
        %p290 = pneg %p197
        %p291 = pneg %p194
        %s292 = sand.u32 %s184, 1
        %s293 = scalar_lea.sflag [#allocation4], %s292
        %s294 = sand.u32 %s184, 1
        %s295 = smul.addr %s294, 8
        %s296 = scalar_lea.vmem [#allocation5], %s295
        %v297 = vld [vmem:[%s266] sm:$0xff]
        %v298 = vld [vmem:[%s266 + $0x8] sm:$0xff]
        %v299 = vld [vmem:[%s266 + $0x10] sm:$0xff]
        %v300 = vld [vmem:[%s266 + $0x18] sm:$0xff]
        %v301 = vld [vmem:[%s266 + $0x20] sm:$0xff]
        %v302 = vld [vmem:[%s266 + $0x28] sm:$0xff]
        %v303 = vld [vmem:[%s266 + $0x30] sm:$0xff]
        %v304 = vld [vmem:[%s266 + $0x38] sm:$0xff]
        %v305 = vld [vmem:[%s266 + $0x40] sm:$0xff]
        %v306 = vld [vmem:[%s266 + $0x48] sm:$0xff]
        %v307 = vld [vmem:[%s266 + $0x50] sm:$0xff]
        %v308 = vld [vmem:[%s266 + $0x58] sm:$0xff]
        %v309 = vld [vmem:[%s266 + $0x60] sm:$0xff]
        %v310 = vld [vmem:[%s266 + $0x68] sm:$0xff]
        %v311 = vld [vmem:[%s266 + $0x70] sm:$0xff]
        %v312 = vld [vmem:[%s266 + $0x78] sm:$0xff]
        %v313 = vld [vmem:[%s1] sm:$0xff]
        %v314 = vld [vmem:[%s2] sm:$0xff]
        %316 = vset.pattern.permute.xlu0 0
        %317 = vperm.xlu0 %316, %v314
        %v318 = vpop.permute.xlu0 %317
        %vm320 = vcmask 130048
        %v322 = vsel %vm320, %v313, 0
        %324 = vmatprep.subr.mxu0 0.0
        %325 = vmatpush1.msra.mxu0 0.0
        %326 = vmatprep.subr.mxu0 0.0
        %327 = vmatpush1.msra.mxu0 0.0
        %328 = vmatprep.subr.mxu0 0.0
        %329 = vmatpush1.msra.mxu0 0.0
        %330 = vmatprep.subr.mxu0 0.0
        %331 = vmatpush1.msra.mxu0 0.0
        %332 = vmatprep.subr.mxu0 0.0
        %333 = vmatpush1.msra.mxu0 0.0
        %334 = vmatprep.subr.mxu0 0.0
        %335 = vmatpush1.msra.mxu0 0.0
        %336 = vmatprep.subr.mxu0 0.0
        %337 = vmatpush1.msra.mxu0 0.0
        %338 = vmatprep.subr.mxu0 0.0
        %339 = vmatpush1.msra.mxu0 0.0
        %340 = vmatprep.subr.mxu0 0.0
        %341 = vmatpush1.msra.mxu0 0.0
        %342 = vmatprep.subr.mxu0 0.0
        %343 = vmatpush1.msra.mxu0 0.0
        %344 = vmatprep.subr.mxu0 0.0
        %345 = vmatpush1.msra.mxu0 0.0
        %346 = vmatprep.subr.mxu0 0.0
        %347 = vmatpush1.msra.mxu0 0.0
        %348 = vmatprep.subr.mxu0 0.0
        %349 = vmatpush1.msra.mxu0 0.0
        %350 = vmatprep.subr.mxu0 0.0
        %351 = vmatpush1.msra.mxu0 0.0
        %352 = vmatprep.subr.mxu0 %v306
        %353 = vmatpush1.msra.mxu0 %v305
        %354 = vmatprep.subr.mxu0 %v298
        %355 = vmatpush1.msra.mxu0 %v297
        %356 = vmatprep.subr.mxu0 0.0
        %357 = vmatpush2.msra.mxu0 0.0
        %358 = vmatprep.subr.mxu0 0.0
        %359 = vmatpush2.msra.mxu0 0.0
        %360 = vmatprep.subr.mxu0 0.0
        %361 = vmatpush2.msra.mxu0 0.0
        %362 = vmatprep.subr.mxu0 0.0
        %363 = vmatpush2.msra.mxu0 0.0
        %364 = vmatprep.subr.mxu0 0.0
        %365 = vmatpush2.msra.mxu0 0.0
        %366 = vmatprep.subr.mxu0 0.0
        %367 = vmatpush2.msra.mxu0 0.0
        %368 = vmatprep.subr.mxu0 0.0
        %369 = vmatpush2.msra.mxu0 0.0
        %370 = vmatprep.subr.mxu0 0.0
        %371 = vmatpush2.msra.mxu0 0.0
        %372 = vmatprep.subr.mxu0 0.0
        %373 = vmatpush2.msra.mxu0 0.0
        %374 = vmatprep.subr.mxu0 0.0
        %375 = vmatpush2.msra.mxu0 0.0
        %376 = vmatprep.subr.mxu0 0.0
        %377 = vmatpush2.msra.mxu0 0.0
        %378 = vmatprep.subr.mxu0 0.0
        %379 = vmatpush2.msra.mxu0 0.0
        %380 = vmatprep.subr.mxu0 0.0
        %381 = vmatpush2.msra.mxu0 0.0
        %382 = vmatprep.subr.mxu0 0.0
        %383 = vmatpush2.msra.mxu0 0.0
        %384 = vmatprep.subr.mxu0 0.0
        %385 = vmatpush2.msra.mxu0 0.0
        %386 = vmatprep.subr.mxu0 0.0
        %387 = vmatpush2.msra.mxu0 0.0
        %388 = vmatprep.mubr.f32.mxu0 0.0
        %389 = vmatmul.mubr.f32.gmra.mxu0 %v322
        %v390 = vpop.f32.mrf.mxu0
        %v391 = vadd.f32 %v318, %v390
        %v392 = vpop.f32.mrf.mxu0
        %v393 = vadd.f32 %v318, %v392
        %394 = vdwg.mxu0
        %395 = vmatprep.subr.mxu0 0.0
        %396 = vmatpush1.msra.mxu0 0.0
        %397 = vmatprep.subr.mxu0 0.0
        %398 = vmatpush1.msra.mxu0 0.0
        %399 = vmatprep.subr.mxu0 0.0
        %400 = vmatpush1.msra.mxu0 0.0
        %401 = vmatprep.subr.mxu0 0.0
        %402 = vmatpush1.msra.mxu0 0.0
        %403 = vmatprep.subr.mxu0 0.0
        %404 = vmatpush1.msra.mxu0 0.0
        %405 = vmatprep.subr.mxu0 0.0
        %406 = vmatpush1.msra.mxu0 0.0
        %407 = vmatprep.subr.mxu0 0.0
        %408 = vmatpush1.msra.mxu0 0.0
        %409 = vmatprep.subr.mxu0 0.0
        %410 = vmatpush1.msra.mxu0 0.0
        %411 = vmatprep.subr.mxu0 0.0
        %412 = vmatpush1.msra.mxu0 0.0
        %413 = vmatprep.subr.mxu0 0.0
        %414 = vmatpush1.msra.mxu0 0.0
        %415 = vmatprep.subr.mxu0 0.0
        %416 = vmatpush1.msra.mxu0 0.0
        %417 = vmatprep.subr.mxu0 0.0
        %418 = vmatpush1.msra.mxu0 0.0
        %419 = vmatprep.subr.mxu0 0.0
        %420 = vmatpush1.msra.mxu0 0.0
        %421 = vmatprep.subr.mxu0 0.0
        %422 = vmatpush1.msra.mxu0 0.0
        %423 = vmatprep.subr.mxu0 %v308
        %424 = vmatpush1.msra.mxu0 %v307
        %425 = vmatprep.subr.mxu0 %v300
        %426 = vmatpush1.msra.mxu0 %v299
        %427 = vmatprep.subr.mxu0 0.0
        %428 = vmatpush2.msra.mxu0 0.0
        %429 = vmatprep.subr.mxu0 0.0
        %430 = vmatpush2.msra.mxu0 0.0
        %431 = vmatprep.subr.mxu0 0.0
        %432 = vmatpush2.msra.mxu0 0.0
        %433 = vmatprep.subr.mxu0 0.0
        %434 = vmatpush2.msra.mxu0 0.0
        %435 = vmatprep.subr.mxu0 0.0
        %436 = vmatpush2.msra.mxu0 0.0
        %437 = vmatprep.subr.mxu0 0.0
        %438 = vmatpush2.msra.mxu0 0.0
        %439 = vmatprep.subr.mxu0 0.0
        %440 = vmatpush2.msra.mxu0 0.0
        %441 = vmatprep.subr.mxu0 0.0
        %442 = vmatpush2.msra.mxu0 0.0
        %443 = vmatprep.subr.mxu0 0.0
        %444 = vmatpush2.msra.mxu0 0.0
        %445 = vmatprep.subr.mxu0 0.0
        %446 = vmatpush2.msra.mxu0 0.0
        %447 = vmatprep.subr.mxu0 0.0
        %448 = vmatpush2.msra.mxu0 0.0
        %449 = vmatprep.subr.mxu0 0.0
        %450 = vmatpush2.msra.mxu0 0.0
        %451 = vmatprep.subr.mxu0 0.0
        %452 = vmatpush2.msra.mxu0 0.0
        %453 = vmatprep.subr.mxu0 0.0
        %454 = vmatpush2.msra.mxu0 0.0
        %455 = vmatprep.subr.mxu0 0.0
        %456 = vmatpush2.msra.mxu0 0.0
        %457 = vmatprep.subr.mxu0 0.0
        %458 = vmatpush2.msra.mxu0 0.0
        %459 = vmatprep.mubr.f32.mxu0 0.0
        %460 = vmatmul.mubr.f32.gmra.mxu0 %v322
        %v461 = vpop.f32.mrf.mxu0
        %v462 = vadd.f32 %v318, %v461
        %v463 = vpop.f32.mrf.mxu0
        %v464 = vadd.f32 %v318, %v463
        %465 = vdwg.mxu0
        %466 = vmatprep.subr.mxu0 0.0
        %467 = vmatpush1.msra.mxu0 0.0
        %468 = vmatprep.subr.mxu0 0.0
        %469 = vmatpush1.msra.mxu0 0.0
        %470 = vmatprep.subr.mxu0 0.0
        %471 = vmatpush1.msra.mxu0 0.0
        %472 = vmatprep.subr.mxu0 0.0
        %473 = vmatpush1.msra.mxu0 0.0
        %474 = vmatprep.subr.mxu0 0.0
        %475 = vmatpush1.msra.mxu0 0.0
        %476 = vmatprep.subr.mxu0 0.0
        %477 = vmatpush1.msra.mxu0 0.0
        %478 = vmatprep.subr.mxu0 0.0
        %479 = vmatpush1.msra.mxu0 0.0
        %480 = vmatprep.subr.mxu0 0.0
        %481 = vmatpush1.msra.mxu0 0.0
        %482 = vmatprep.subr.mxu0 0.0
        %483 = vmatpush1.msra.mxu0 0.0
        %484 = vmatprep.subr.mxu0 0.0
        %485 = vmatpush1.msra.mxu0 0.0
        %486 = vmatprep.subr.mxu0 0.0
        %487 = vmatpush1.msra.mxu0 0.0
        %488 = vmatprep.subr.mxu0 0.0
        %489 = vmatpush1.msra.mxu0 0.0
        %490 = vmatprep.subr.mxu0 0.0
        %491 = vmatpush1.msra.mxu0 0.0
        %492 = vmatprep.subr.mxu0 0.0
        %493 = vmatpush1.msra.mxu0 0.0
        %494 = vmatprep.subr.mxu0 %v310
        %495 = vmatpush1.msra.mxu0 %v309
        %496 = vmatprep.subr.mxu0 %v302
        %497 = vmatpush1.msra.mxu0 %v301
        %498 = vmatprep.subr.mxu0 0.0
        %499 = vmatpush2.msra.mxu0 0.0
        %500 = vmatprep.subr.mxu0 0.0
        %501 = vmatpush2.msra.mxu0 0.0
        %502 = vmatprep.subr.mxu0 0.0
        %503 = vmatpush2.msra.mxu0 0.0
        %504 = vmatprep.subr.mxu0 0.0
        %505 = vmatpush2.msra.mxu0 0.0
        %506 = vmatprep.subr.mxu0 0.0
        %507 = vmatpush2.msra.mxu0 0.0
        %508 = vmatprep.subr.mxu0 0.0
        %509 = vmatpush2.msra.mxu0 0.0
        %510 = vmatprep.subr.mxu0 0.0
        %511 = vmatpush2.msra.mxu0 0.0
        %512 = vmatprep.subr.mxu0 0.0
        %513 = vmatpush2.msra.mxu0 0.0
        %514 = vmatprep.subr.mxu0 0.0
        %515 = vmatpush2.msra.mxu0 0.0
        %516 = vmatprep.subr.mxu0 0.0
        %517 = vmatpush2.msra.mxu0 0.0
        %518 = vmatprep.subr.mxu0 0.0
        %519 = vmatpush2.msra.mxu0 0.0
        %520 = vmatprep.subr.mxu0 0.0
        %521 = vmatpush2.msra.mxu0 0.0
        %522 = vmatprep.subr.mxu0 0.0
        %523 = vmatpush2.msra.mxu0 0.0
        %524 = vmatprep.subr.mxu0 0.0
        %525 = vmatpush2.msra.mxu0 0.0
        %526 = vmatprep.subr.mxu0 0.0
        %527 = vmatpush2.msra.mxu0 0.0
        %528 = vmatprep.subr.mxu0 0.0
        %529 = vmatpush2.msra.mxu0 0.0
        %530 = vmatprep.mubr.f32.mxu0 0.0
        %531 = vmatmul.mubr.f32.gmra.mxu0 %v322
        %v532 = vpop.f32.mrf.mxu0
        %v533 = vadd.f32 %v318, %v532
        %v534 = vpop.f32.mrf.mxu0
        %v535 = vadd.f32 %v318, %v534
        %536 = vdwg.mxu0
        %537 = vmatprep.subr.mxu0 0.0
        %538 = vmatpush1.msra.mxu0 0.0
        %539 = vmatprep.subr.mxu0 0.0
        %540 = vmatpush1.msra.mxu0 0.0
        %541 = vmatprep.subr.mxu0 0.0
        %542 = vmatpush1.msra.mxu0 0.0
        %543 = vmatprep.subr.mxu0 0.0
        %544 = vmatpush1.msra.mxu0 0.0
        %545 = vmatprep.subr.mxu0 0.0
        %546 = vmatpush1.msra.mxu0 0.0
        %547 = vmatprep.subr.mxu0 0.0
        %548 = vmatpush1.msra.mxu0 0.0
        %549 = vmatprep.subr.mxu0 0.0
        %550 = vmatpush1.msra.mxu0 0.0
        %551 = vmatprep.subr.mxu0 0.0
        %552 = vmatpush1.msra.mxu0 0.0
        %553 = vmatprep.subr.mxu0 0.0
        %554 = vmatpush1.msra.mxu0 0.0
        %555 = vmatprep.subr.mxu0 0.0
        %556 = vmatpush1.msra.mxu0 0.0
        %557 = vmatprep.subr.mxu0 0.0
        %558 = vmatpush1.msra.mxu0 0.0
        %559 = vmatprep.subr.mxu0 0.0
        %560 = vmatpush1.msra.mxu0 0.0
        %561 = vmatprep.subr.mxu0 0.0
        %562 = vmatpush1.msra.mxu0 0.0
        %563 = vmatprep.subr.mxu0 0.0
        %564 = vmatpush1.msra.mxu0 0.0
        %565 = vmatprep.subr.mxu0 %v312
        %566 = vmatpush1.msra.mxu0 %v311
        %567 = vmatprep.subr.mxu0 %v304
        %568 = vmatpush1.msra.mxu0 %v303
        %569 = vmatprep.subr.mxu0 0.0
        %570 = vmatpush2.msra.mxu0 0.0
        %571 = vmatprep.subr.mxu0 0.0
        %572 = vmatpush2.msra.mxu0 0.0
        %573 = vmatprep.subr.mxu0 0.0
        %574 = vmatpush2.msra.mxu0 0.0
        %575 = vmatprep.subr.mxu0 0.0
        %576 = vmatpush2.msra.mxu0 0.0
        %577 = vmatprep.subr.mxu0 0.0
        %578 = vmatpush2.msra.mxu0 0.0
        %579 = vmatprep.subr.mxu0 0.0
        %580 = vmatpush2.msra.mxu0 0.0
        %581 = vmatprep.subr.mxu0 0.0
        %582 = vmatpush2.msra.mxu0 0.0
        %583 = vmatprep.subr.mxu0 0.0
        %584 = vmatpush2.msra.mxu0 0.0
        %585 = vmatprep.subr.mxu0 0.0
        %586 = vmatpush2.msra.mxu0 0.0
        %587 = vmatprep.subr.mxu0 0.0
        %588 = vmatpush2.msra.mxu0 0.0
        %589 = vmatprep.subr.mxu0 0.0
        %590 = vmatpush2.msra.mxu0 0.0
        %591 = vmatprep.subr.mxu0 0.0
        %592 = vmatpush2.msra.mxu0 0.0
        %593 = vmatprep.subr.mxu0 0.0
        %594 = vmatpush2.msra.mxu0 0.0
        %595 = vmatprep.subr.mxu0 0.0
        %596 = vmatpush2.msra.mxu0 0.0
        %597 = vmatprep.subr.mxu0 0.0
        %598 = vmatpush2.msra.mxu0 0.0
        %599 = vmatprep.subr.mxu0 0.0
        %600 = vmatpush2.msra.mxu0 0.0
        %601 = vmatprep.mubr.f32.mxu0 0.0
        %602 = vmatmul.mubr.f32.gmra.mxu0 %v322
        %v603 = vpop.f32.mrf.mxu0
        %v604 = vadd.f32 %v318, %v603
        %v605 = vpop.f32.mrf.mxu0
        %v606 = vadd.f32 %v318, %v605
        %607 = vdwg.mxu0
        %v608 = vmul.f32 %v391, 0.5
        %v609 = vmul.f32 %v393, 0.5
        %v610 = vmul.f32 %v462, 0.5
        %v611 = vmul.f32 %v464, 0.5
        %v612 = vmul.f32 %v533, 0.5
        %v613 = vmul.f32 %v535, 0.5
        %v614 = vmul.f32 %v604, 0.5
        %v615 = vmul.f32 %v606, 0.5
        %v616 = vmul.f32 %v391, 0.70710677
        %v617 = vmul.f32 %v393, 0.70710677
        %v618 = vmul.f32 %v462, 0.70710677
        %v619 = vmul.f32 %v464, 0.70710677
        %v620 = vmul.f32 %v533, 0.70710677
        %v621 = vmul.f32 %v535, 0.70710677
        %v622 = vmul.f32 %v604, 0.70710677
        %v623 = vmul.f32 %v606, 0.70710677
        %v624 = verf.f32.pop %v616
        %v625 = verf.f32.pop %v617
        %v626 = verf.f32.pop %v618
        %v627 = verf.f32.pop %v619
        %v628 = verf.f32.pop %v620
        %v629 = verf.f32.pop %v621
        %v630 = verf.f32.pop %v622
        %v631 = verf.f32.pop %v623
        %v632 = vadd.f32 %v624, 1.0
        %v633 = vadd.f32 %v625, 1.0
        %v634 = vadd.f32 %v626, 1.0
        %v635 = vadd.f32 %v627, 1.0
        %v636 = vadd.f32 %v628, 1.0
        %v637 = vadd.f32 %v629, 1.0
        %v638 = vadd.f32 %v630, 1.0
        %v639 = vadd.f32 %v631, 1.0
        %v640 = vmul.f32 %v608, %v632
        %v641 = vmul.f32 %v609, %v633
        %v642 = vmul.f32 %v610, %v634
        %v643 = vmul.f32 %v611, %v635
        %v644 = vmul.f32 %v612, %v636
        %v645 = vmul.f32 %v613, %v637
        %v646 = vmul.f32 %v614, %v638
        %v647 = vmul.f32 %v615, %v639
        %v648 = vld [vmem:[%s3] sm:$0xff]
        %v649 = vld [vmem:[%s3 + $0x8] sm:$0xff]
        %v650 = vld [vmem:[%s3 + $0x10] sm:$0xff]
        %v651 = vld [vmem:[%s4] sm:$0xff]
        %v652 = vld [vmem:[%s4 + $0x8] sm:$0xff]
        %v653 = vld [vmem:[%s4 + $0x10] sm:$0xff]
        %655 = vset.pattern.permute.xlu0 0
        %656 = vperm.xlu0 %655, %v651
        %v657 = vpop.permute.xlu0 %656
        %660 = vset.pattern.permute.xlu0 0
        %661 = vperm.xlu0 %660, %v652
        %v662 = vpop.permute.xlu0 %661
        %665 = vset.pattern.permute.xlu0 0
        %666 = vperm.xlu0 %665, %v653
        %v667 = vpop.permute.xlu0 %666
        %vm669 = vcmask 64512
        %v671 = vsel %vm669, %v648, 0
        %v674 = vsel %vm669, %v649, 0
        %v677 = vsel %vm669, %v650, 0
        %679 = vmatprep.subr.mxu0 0.0
        %680 = vmatpush1.msra.mxu0 0.0
        %681 = vmatprep.subr.mxu0 0.0
        %682 = vmatpush1.msra.mxu0 0.0
        %683 = vmatprep.subr.mxu0 0.0
        %684 = vmatpush1.msra.mxu0 0.0
        %685 = vmatprep.subr.mxu0 0.0
        %686 = vmatpush1.msra.mxu0 0.0
        %687 = vmatprep.subr.mxu0 0.0
        %688 = vmatpush1.msra.mxu0 0.0
        %689 = vmatprep.subr.mxu0 0.0
        %690 = vmatpush1.msra.mxu0 0.0
        %691 = vmatprep.subr.mxu0 0.0
        %692 = vmatpush1.msra.mxu0 0.0
        %693 = vmatprep.subr.mxu0 0.0
        %694 = vmatpush1.msra.mxu0 0.0
        %695 = vmatprep.subr.mxu0 0.0
        %696 = vmatpush1.msra.mxu0 0.0
        %697 = vmatprep.subr.mxu0 0.0
        %698 = vmatpush1.msra.mxu0 0.0
        %699 = vmatprep.subr.mxu0 0.0
        %700 = vmatpush1.msra.mxu0 0.0
        %701 = vmatprep.subr.mxu0 0.0
        %702 = vmatpush1.msra.mxu0 0.0
        %703 = vmatprep.subr.mxu0 0.0
        %704 = vmatpush1.msra.mxu0 0.0
        %705 = vmatprep.subr.mxu0 0.0
        %706 = vmatpush1.msra.mxu0 0.0
        %707 = vmatprep.subr.mxu0 0.0
        %708 = vmatpush1.msra.mxu0 0.0
        %709 = vmatprep.subr.mxu0 %v641
        %710 = vmatpush1.msra.mxu0 %v640
        %711 = vmatprep.subr.mxu0 0.0
        %712 = vmatpush2.msra.mxu0 0.0
        %713 = vmatprep.subr.mxu0 0.0
        %714 = vmatpush2.msra.mxu0 0.0
        %715 = vmatprep.subr.mxu0 0.0
        %716 = vmatpush2.msra.mxu0 0.0
        %717 = vmatprep.subr.mxu0 0.0
        %718 = vmatpush2.msra.mxu0 0.0
        %719 = vmatprep.subr.mxu0 0.0
        %720 = vmatpush2.msra.mxu0 0.0
        %721 = vmatprep.subr.mxu0 0.0
        %722 = vmatpush2.msra.mxu0 0.0
        %723 = vmatprep.subr.mxu0 0.0
        %724 = vmatpush2.msra.mxu0 0.0
        %725 = vmatprep.subr.mxu0 0.0
        %726 = vmatpush2.msra.mxu0 0.0
        %727 = vmatprep.subr.mxu0 0.0
        %728 = vmatpush2.msra.mxu0 0.0
        %729 = vmatprep.subr.mxu0 0.0
        %730 = vmatpush2.msra.mxu0 0.0
        %731 = vmatprep.subr.mxu0 0.0
        %732 = vmatpush2.msra.mxu0 0.0
        %733 = vmatprep.subr.mxu0 0.0
        %734 = vmatpush2.msra.mxu0 0.0
        %735 = vmatprep.subr.mxu0 0.0
        %736 = vmatpush2.msra.mxu0 0.0
        %737 = vmatprep.subr.mxu0 0.0
        %738 = vmatpush2.msra.mxu0 0.0
        %739 = vmatprep.subr.mxu0 0.0
        %740 = vmatpush2.msra.mxu0 0.0
        %741 = vmatprep.subr.mxu0 0.0
        %742 = vmatpush2.msra.mxu0 0.0
        %743 = vmatprep.mubr.f32.mxu0 0.0
        %744 = vmatmul.mubr.f32.gmra.mxu0 %v671
        %v745 = vpop.f32.mrf.mxu0
        %v746 = vadd.f32 %v657, %v745
        %v747 = vpop.f32.mrf.mxu0
        %v748 = vadd.f32 %v657, %v747
        %749 = vmatprep.mubr.f32.mxu0 0.0
        %750 = vmatmul.mubr.f32.gmra.mxu0 %v674
        %v751 = vpop.f32.mrf.mxu0
        %v752 = vadd.f32 %v662, %v751
        %v753 = vpop.f32.mrf.mxu0
        %v754 = vadd.f32 %v662, %v753
        %755 = vmatprep.mubr.f32.mxu0 0.0
        %756 = vmatmul.mubr.f32.gmra.mxu0 %v677
        %v757 = vpop.f32.mrf.mxu0
        %v758 = vadd.f32 %v667, %v757
        %v759 = vpop.f32.mrf.mxu0
        %v760 = vadd.f32 %v667, %v759
        %761 = vdwg.mxu0
        %762 = vmatprep.subr.mxu0 0.0
        %763 = vmatpush1.msra.mxu0 0.0
        %764 = vmatprep.subr.mxu0 0.0
        %765 = vmatpush1.msra.mxu0 0.0
        %766 = vmatprep.subr.mxu0 0.0
        %767 = vmatpush1.msra.mxu0 0.0
        %768 = vmatprep.subr.mxu0 0.0
        %769 = vmatpush1.msra.mxu0 0.0
        %770 = vmatprep.subr.mxu0 0.0
        %771 = vmatpush1.msra.mxu0 0.0
        %772 = vmatprep.subr.mxu0 0.0
        %773 = vmatpush1.msra.mxu0 0.0
        %774 = vmatprep.subr.mxu0 0.0
        %775 = vmatpush1.msra.mxu0 0.0
        %776 = vmatprep.subr.mxu0 0.0
        %777 = vmatpush1.msra.mxu0 0.0
        %778 = vmatprep.subr.mxu0 0.0
        %779 = vmatpush1.msra.mxu0 0.0
        %780 = vmatprep.subr.mxu0 0.0
        %781 = vmatpush1.msra.mxu0 0.0
        %782 = vmatprep.subr.mxu0 0.0
        %783 = vmatpush1.msra.mxu0 0.0
        %784 = vmatprep.subr.mxu0 0.0
        %785 = vmatpush1.msra.mxu0 0.0
        %786 = vmatprep.subr.mxu0 0.0
        %787 = vmatpush1.msra.mxu0 0.0
        %788 = vmatprep.subr.mxu0 0.0
        %789 = vmatpush1.msra.mxu0 0.0
        %790 = vmatprep.subr.mxu0 0.0
        %791 = vmatpush1.msra.mxu0 0.0
        %792 = vmatprep.subr.mxu0 %v643
        %793 = vmatpush1.msra.mxu0 %v642
        %794 = vmatprep.subr.mxu0 0.0
        %795 = vmatpush2.msra.mxu0 0.0
        %796 = vmatprep.subr.mxu0 0.0
        %797 = vmatpush2.msra.mxu0 0.0
        %798 = vmatprep.subr.mxu0 0.0
        %799 = vmatpush2.msra.mxu0 0.0
        %800 = vmatprep.subr.mxu0 0.0
        %801 = vmatpush2.msra.mxu0 0.0
        %802 = vmatprep.subr.mxu0 0.0
        %803 = vmatpush2.msra.mxu0 0.0
        %804 = vmatprep.subr.mxu0 0.0
        %805 = vmatpush2.msra.mxu0 0.0
        %806 = vmatprep.subr.mxu0 0.0
        %807 = vmatpush2.msra.mxu0 0.0
        %808 = vmatprep.subr.mxu0 0.0
        %809 = vmatpush2.msra.mxu0 0.0
        %810 = vmatprep.subr.mxu0 0.0
        %811 = vmatpush2.msra.mxu0 0.0
        %812 = vmatprep.subr.mxu0 0.0
        %813 = vmatpush2.msra.mxu0 0.0
        %814 = vmatprep.subr.mxu0 0.0
        %815 = vmatpush2.msra.mxu0 0.0
        %816 = vmatprep.subr.mxu0 0.0
        %817 = vmatpush2.msra.mxu0 0.0
        %818 = vmatprep.subr.mxu0 0.0
        %819 = vmatpush2.msra.mxu0 0.0
        %820 = vmatprep.subr.mxu0 0.0
        %821 = vmatpush2.msra.mxu0 0.0
        %822 = vmatprep.subr.mxu0 0.0
        %823 = vmatpush2.msra.mxu0 0.0
        %824 = vmatprep.subr.mxu0 0.0
        %825 = vmatpush2.msra.mxu0 0.0
        %826 = vmatprep.mubr.f32.mxu0 0.0
        %827 = vmatmul.mubr.f32.gmra.mxu0 %v671
        %v828 = vpop.f32.mrf.mxu0
        %v829 = vadd.f32 %v657, %v828
        %v830 = vpop.f32.mrf.mxu0
        %v831 = vadd.f32 %v657, %v830
        %832 = vmatprep.mubr.f32.mxu0 0.0
        %833 = vmatmul.mubr.f32.gmra.mxu0 %v674
        %v834 = vpop.f32.mrf.mxu0
        %v835 = vadd.f32 %v662, %v834
        %v836 = vpop.f32.mrf.mxu0
        %v837 = vadd.f32 %v662, %v836
        %838 = vmatprep.mubr.f32.mxu0 0.0
        %839 = vmatmul.mubr.f32.gmra.mxu0 %v677
        %v840 = vpop.f32.mrf.mxu0
        %v841 = vadd.f32 %v667, %v840
        %v842 = vpop.f32.mrf.mxu0
        %v843 = vadd.f32 %v667, %v842
        %844 = vdwg.mxu0
        %845 = vmatprep.subr.mxu0 0.0
        %846 = vmatpush1.msra.mxu0 0.0
        %847 = vmatprep.subr.mxu0 0.0
        %848 = vmatpush1.msra.mxu0 0.0
        %849 = vmatprep.subr.mxu0 0.0
        %850 = vmatpush1.msra.mxu0 0.0
        %851 = vmatprep.subr.mxu0 0.0
        %852 = vmatpush1.msra.mxu0 0.0
        %853 = vmatprep.subr.mxu0 0.0
        %854 = vmatpush1.msra.mxu0 0.0
        %855 = vmatprep.subr.mxu0 0.0
        %856 = vmatpush1.msra.mxu0 0.0
        %857 = vmatprep.subr.mxu0 0.0
        %858 = vmatpush1.msra.mxu0 0.0
        %859 = vmatprep.subr.mxu0 0.0
        %860 = vmatpush1.msra.mxu0 0.0
        %861 = vmatprep.subr.mxu0 0.0
        %862 = vmatpush1.msra.mxu0 0.0
        %863 = vmatprep.subr.mxu0 0.0
        %864 = vmatpush1.msra.mxu0 0.0
        %865 = vmatprep.subr.mxu0 0.0
        %866 = vmatpush1.msra.mxu0 0.0
        %867 = vmatprep.subr.mxu0 0.0
        %868 = vmatpush1.msra.mxu0 0.0
        %869 = vmatprep.subr.mxu0 0.0
        %870 = vmatpush1.msra.mxu0 0.0
        %871 = vmatprep.subr.mxu0 0.0
        %872 = vmatpush1.msra.mxu0 0.0
        %873 = vmatprep.subr.mxu0 0.0
        %874 = vmatpush1.msra.mxu0 0.0
        %875 = vmatprep.subr.mxu0 %v645
        %876 = vmatpush1.msra.mxu0 %v644
        %877 = vmatprep.subr.mxu0 0.0
        %878 = vmatpush2.msra.mxu0 0.0
        %879 = vmatprep.subr.mxu0 0.0
        %880 = vmatpush2.msra.mxu0 0.0
        %881 = vmatprep.subr.mxu0 0.0
        %882 = vmatpush2.msra.mxu0 0.0
        %883 = vmatprep.subr.mxu0 0.0
        %884 = vmatpush2.msra.mxu0 0.0
        %885 = vmatprep.subr.mxu0 0.0
        %886 = vmatpush2.msra.mxu0 0.0
        %887 = vmatprep.subr.mxu0 0.0
        %888 = vmatpush2.msra.mxu0 0.0
        %889 = vmatprep.subr.mxu0 0.0
        %890 = vmatpush2.msra.mxu0 0.0
        %891 = vmatprep.subr.mxu0 0.0
        %892 = vmatpush2.msra.mxu0 0.0
        %893 = vmatprep.subr.mxu0 0.0
        %894 = vmatpush2.msra.mxu0 0.0
        %895 = vmatprep.subr.mxu0 0.0
        %896 = vmatpush2.msra.mxu0 0.0
        %897 = vmatprep.subr.mxu0 0.0
        %898 = vmatpush2.msra.mxu0 0.0
        %899 = vmatprep.subr.mxu0 0.0
        %900 = vmatpush2.msra.mxu0 0.0
        %901 = vmatprep.subr.mxu0 0.0
        %902 = vmatpush2.msra.mxu0 0.0
        %903 = vmatprep.subr.mxu0 0.0
        %904 = vmatpush2.msra.mxu0 0.0
        %905 = vmatprep.subr.mxu0 0.0
        %906 = vmatpush2.msra.mxu0 0.0
        %907 = vmatprep.subr.mxu0 0.0
        %908 = vmatpush2.msra.mxu0 0.0
        %909 = vmatprep.mubr.f32.mxu0 0.0
        %910 = vmatmul.mubr.f32.gmra.mxu0 %v671
        %v911 = vpop.f32.mrf.mxu0
        %v912 = vadd.f32 %v657, %v911
        %v913 = vpop.f32.mrf.mxu0
        %v914 = vadd.f32 %v657, %v913
        %915 = vmatprep.mubr.f32.mxu0 0.0
        %916 = vmatmul.mubr.f32.gmra.mxu0 %v674
        %v917 = vpop.f32.mrf.mxu0
        %v918 = vadd.f32 %v662, %v917
        %v919 = vpop.f32.mrf.mxu0
        %v920 = vadd.f32 %v662, %v919
        %921 = vmatprep.mubr.f32.mxu0 0.0
        %922 = vmatmul.mubr.f32.gmra.mxu0 %v677
        %v923 = vpop.f32.mrf.mxu0
        %v924 = vadd.f32 %v667, %v923
        %v925 = vpop.f32.mrf.mxu0
        %v926 = vadd.f32 %v667, %v925
        %927 = vdwg.mxu0
        %928 = vmatprep.subr.mxu0 0.0
        %929 = vmatpush1.msra.mxu0 0.0
        %930 = vmatprep.subr.mxu0 0.0
        %931 = vmatpush1.msra.mxu0 0.0
        %932 = vmatprep.subr.mxu0 0.0
        %933 = vmatpush1.msra.mxu0 0.0
        %934 = vmatprep.subr.mxu0 0.0
        %935 = vmatpush1.msra.mxu0 0.0
        %936 = vmatprep.subr.mxu0 0.0
        %937 = vmatpush1.msra.mxu0 0.0
        %938 = vmatprep.subr.mxu0 0.0
        %939 = vmatpush1.msra.mxu0 0.0
        %940 = vmatprep.subr.mxu0 0.0
        %941 = vmatpush1.msra.mxu0 0.0
        %942 = vmatprep.subr.mxu0 0.0
        %943 = vmatpush1.msra.mxu0 0.0
        %944 = vmatprep.subr.mxu0 0.0
        %945 = vmatpush1.msra.mxu0 0.0
        %946 = vmatprep.subr.mxu0 0.0
        %947 = vmatpush1.msra.mxu0 0.0
        %948 = vmatprep.subr.mxu0 0.0
        %949 = vmatpush1.msra.mxu0 0.0
        %950 = vmatprep.subr.mxu0 0.0
        %951 = vmatpush1.msra.mxu0 0.0
        %952 = vmatprep.subr.mxu0 0.0
        %953 = vmatpush1.msra.mxu0 0.0
        %954 = vmatprep.subr.mxu0 0.0
        %955 = vmatpush1.msra.mxu0 0.0
        %956 = vmatprep.subr.mxu0 0.0
        %957 = vmatpush1.msra.mxu0 0.0
        %958 = vmatprep.subr.mxu0 %v647
        %959 = vmatpush1.msra.mxu0 %v646
        %960 = vmatprep.subr.mxu0 0.0
        %961 = vmatpush2.msra.mxu0 0.0
        %962 = vmatprep.subr.mxu0 0.0
        %963 = vmatpush2.msra.mxu0 0.0
        %964 = vmatprep.subr.mxu0 0.0
        %965 = vmatpush2.msra.mxu0 0.0
        %966 = vmatprep.subr.mxu0 0.0
        %967 = vmatpush2.msra.mxu0 0.0
        %968 = vmatprep.subr.mxu0 0.0
        %969 = vmatpush2.msra.mxu0 0.0
        %970 = vmatprep.subr.mxu0 0.0
        %971 = vmatpush2.msra.mxu0 0.0
        %972 = vmatprep.subr.mxu0 0.0
        %973 = vmatpush2.msra.mxu0 0.0
        %974 = vmatprep.subr.mxu0 0.0
        %975 = vmatpush2.msra.mxu0 0.0
        %976 = vmatprep.subr.mxu0 0.0
        %977 = vmatpush2.msra.mxu0 0.0
        %978 = vmatprep.subr.mxu0 0.0
        %979 = vmatpush2.msra.mxu0 0.0
        %980 = vmatprep.subr.mxu0 0.0
        %981 = vmatpush2.msra.mxu0 0.0
        %982 = vmatprep.subr.mxu0 0.0
        %983 = vmatpush2.msra.mxu0 0.0
        %984 = vmatprep.subr.mxu0 0.0
        %985 = vmatpush2.msra.mxu0 0.0
        %986 = vmatprep.subr.mxu0 0.0
        %987 = vmatpush2.msra.mxu0 0.0
        %988 = vmatprep.subr.mxu0 0.0
        %989 = vmatpush2.msra.mxu0 0.0
        %990 = vmatprep.subr.mxu0 0.0
        %991 = vmatpush2.msra.mxu0 0.0
        %992 = vmatprep.mubr.f32.mxu0 0.0
        %993 = vmatmul.mubr.f32.gmra.mxu0 %v671
        %v994 = vpop.f32.mrf.mxu0
        %v995 = vadd.f32 %v657, %v994
        %v996 = vpop.f32.mrf.mxu0
        %v997 = vadd.f32 %v657, %v996
        %998 = vmatprep.mubr.f32.mxu0 0.0
        %999 = vmatmul.mubr.f32.gmra.mxu0 %v674
        %v1000 = vpop.f32.mrf.mxu0
        %v1001 = vadd.f32 %v662, %v1000
        %v1002 = vpop.f32.mrf.mxu0
        %v1003 = vadd.f32 %v662, %v1002
        %1004 = vmatprep.mubr.f32.mxu0 0.0
        %1005 = vmatmul.mubr.f32.gmra.mxu0 %v677
        %v1006 = vpop.f32.mrf.mxu0
        %v1007 = vadd.f32 %v667, %v1006
        %v1008 = vpop.f32.mrf.mxu0
        %v1009 = vadd.f32 %v667, %v1008
        %1010 = vdwg.mxu0
        %v1011 = vmul.f32 %v746, %v752
        %v1012 = vrot.slane %v1011, 4
        %v1013 = vadd.f32 %v1011, %v1012
        %v1014 = vrot.slane %v1013, 2
        %v1015 = vadd.f32 %v1013, %v1014
        %v1016 = vrot.slane %v1015, 1
        %v1017 = vadd.f32 %v1015, %v1016
        %v1018 = vmul.f32 %v746, %v754
        %v1019 = vrot.slane %v1018, 4
        %v1020 = vadd.f32 %v1018, %v1019
        %v1021 = vrot.slane %v1020, 2
        %v1022 = vadd.f32 %v1020, %v1021
        %v1023 = vrot.slane %v1022, 1
        %v1024 = vadd.f32 %v1022, %v1023
        %v1025 = vmul.f32 %v746, %v835
        %v1026 = vrot.slane %v1025, 4
        %v1027 = vadd.f32 %v1025, %v1026
        %v1028 = vrot.slane %v1027, 2
        %v1029 = vadd.f32 %v1027, %v1028
        %v1030 = vrot.slane %v1029, 1
        %v1031 = vadd.f32 %v1029, %v1030
        %v1032 = vmul.f32 %v746, %v837
        %v1033 = vrot.slane %v1032, 4
        %v1034 = vadd.f32 %v1032, %v1033
        %v1035 = vrot.slane %v1034, 2
        %v1036 = vadd.f32 %v1034, %v1035
        %v1037 = vrot.slane %v1036, 1
        %v1038 = vadd.f32 %v1036, %v1037
        %v1039 = vmul.f32 %v746, %v918
        %v1040 = vrot.slane %v1039, 4
        %v1041 = vadd.f32 %v1039, %v1040
        %v1042 = vrot.slane %v1041, 2
        %v1043 = vadd.f32 %v1041, %v1042
        %v1044 = vrot.slane %v1043, 1
        %v1045 = vadd.f32 %v1043, %v1044
        %v1046 = vmul.f32 %v746, %v920
        %v1047 = vrot.slane %v1046, 4
        %v1048 = vadd.f32 %v1046, %v1047
        %v1049 = vrot.slane %v1048, 2
        %v1050 = vadd.f32 %v1048, %v1049
        %v1051 = vrot.slane %v1050, 1
        %v1052 = vadd.f32 %v1050, %v1051
        %v1053 = vmul.f32 %v746, %v1001
        %v1054 = vrot.slane %v1053, 4
        %v1055 = vadd.f32 %v1053, %v1054
        %v1056 = vrot.slane %v1055, 2
        %v1057 = vadd.f32 %v1055, %v1056
        %v1058 = vrot.slane %v1057, 1
        %v1059 = vadd.f32 %v1057, %v1058
        %v1060 = vmul.f32 %v746, %v1003
        %v1061 = vrot.slane %v1060, 4
        %v1062 = vadd.f32 %v1060, %v1061
        %v1063 = vrot.slane %v1062, 2
        %v1064 = vadd.f32 %v1062, %v1063
        %v1065 = vrot.slane %v1064, 1
        %v1066 = vadd.f32 %v1064, %v1065
        %vm1067 = vcmask 1040384
        %v1068 = vsel %vm1067, %v1017, %v1024
        %vm1069 = vcmask 1041408
        %v1070 = vsel %vm1069, %v1068, %v1031
        %vm1071 = vcmask 1042432
        %v1072 = vsel %vm1071, %v1070, %v1038
        %vm1073 = vcmask 1043456
        %v1074 = vsel %vm1073, %v1072, %v1045
        %vm1075 = vcmask 1044480
        %v1076 = vsel %vm1075, %v1074, %v1052
        %vm1077 = vcmask 1045504
        %v1078 = vsel %vm1077, %v1076, %v1059
        %vm1079 = vcmask 1046528
        %v1080 = vsel %vm1079, %v1078, %v1066
        %v1081 = vrot.slane %v1080, 4
        %v1082 = vmax.f32 %v1080, %v1081
        %v1083 = vrot.slane %v1082, 2
        %v1084 = vmax.f32 %v1082, %v1083
        %v1085 = vrot.slane %v1084, 1
        %v1086 = vmax.f32 %v1084, %v1085
        %v1087 = vsub.f32 %v1080, %v1086
        %v1088 = vmul.f32 %v1087, 1.442695
        %v1089 = vpow.pop %v1088
        %v1090 = vrot.slane %v1089, 4
        %v1091 = vadd.f32 %v1089, %v1090
        %v1092 = vrot.slane %v1091, 2
        %v1093 = vadd.f32 %v1091, %v1092
        %v1094 = vrot.slane %v1093, 1
        %v1095 = vadd.f32 %v1093, %v1094
        %v1096 = vrcp.pop %v1095
        %v1097 = vmul.f32 %v1089, %v1096
        %v1098 = vadd.f32 %v1097, 0.0
        %v1099 = vmul.f32 %v748, %v752
        %v1100 = vrot.slane %v1099, 4
        %v1101 = vadd.f32 %v1099, %v1100
        %v1102 = vrot.slane %v1101, 2
        %v1103 = vadd.f32 %v1101, %v1102
        %v1104 = vrot.slane %v1103, 1
        %v1105 = vadd.f32 %v1103, %v1104
        %v1106 = vmul.f32 %v748, %v754
        %v1107 = vrot.slane %v1106, 4
        %v1108 = vadd.f32 %v1106, %v1107
        %v1109 = vrot.slane %v1108, 2
        %v1110 = vadd.f32 %v1108, %v1109
        %v1111 = vrot.slane %v1110, 1
        %v1112 = vadd.f32 %v1110, %v1111
        %v1113 = vmul.f32 %v748, %v835
        %v1114 = vrot.slane %v1113, 4
        %v1115 = vadd.f32 %v1113, %v1114
        %v1116 = vrot.slane %v1115, 2
        %v1117 = vadd.f32 %v1115, %v1116
        %v1118 = vrot.slane %v1117, 1
        %v1119 = vadd.f32 %v1117, %v1118
        %v1120 = vmul.f32 %v748, %v837
        %v1121 = vrot.slane %v1120, 4
        %v1122 = vadd.f32 %v1120, %v1121
        %v1123 = vrot.slane %v1122, 2
        %v1124 = vadd.f32 %v1122, %v1123
        %v1125 = vrot.slane %v1124, 1
        %v1126 = vadd.f32 %v1124, %v1125
        %v1127 = vmul.f32 %v748, %v918
        %v1128 = vrot.slane %v1127, 4
        %v1129 = vadd.f32 %v1127, %v1128
        %v1130 = vrot.slane %v1129, 2
        %v1131 = vadd.f32 %v1129, %v1130
        %v1132 = vrot.slane %v1131, 1
        %v1133 = vadd.f32 %v1131, %v1132
        %v1134 = vmul.f32 %v748, %v920
        %v1135 = vrot.slane %v1134, 4
        %v1136 = vadd.f32 %v1134, %v1135
        %v1137 = vrot.slane %v1136, 2
        %v1138 = vadd.f32 %v1136, %v1137
        %v1139 = vrot.slane %v1138, 1
        %v1140 = vadd.f32 %v1138, %v1139
        %v1141 = vmul.f32 %v748, %v1001
        %v1142 = vrot.slane %v1141, 4
        %v1143 = vadd.f32 %v1141, %v1142
        %v1144 = vrot.slane %v1143, 2
        %v1145 = vadd.f32 %v1143, %v1144
        %v1146 = vrot.slane %v1145, 1
        %v1147 = vadd.f32 %v1145, %v1146
        %v1148 = vmul.f32 %v748, %v1003
        %v1149 = vrot.slane %v1148, 4
        %v1150 = vadd.f32 %v1148, %v1149
        %v1151 = vrot.slane %v1150, 2
        %v1152 = vadd.f32 %v1150, %v1151
        %v1153 = vrot.slane %v1152, 1
        %v1154 = vadd.f32 %v1152, %v1153
        %v1155 = vsel %vm1067, %v1105, %v1112
        %v1156 = vsel %vm1069, %v1155, %v1119
        %v1157 = vsel %vm1071, %v1156, %v1126
        %v1158 = vsel %vm1073, %v1157, %v1133
        %v1159 = vsel %vm1075, %v1158, %v1140
        %v1160 = vsel %vm1077, %v1159, %v1147
        %v1161 = vsel %vm1079, %v1160, %v1154
        %v1162 = vrot.slane %v1161, 4
        %v1163 = vmax.f32 %v1161, %v1162
        %v1164 = vrot.slane %v1163, 2
        %v1165 = vmax.f32 %v1163, %v1164
        %v1166 = vrot.slane %v1165, 1
        %v1167 = vmax.f32 %v1165, %v1166
        %v1168 = vsub.f32 %v1161, %v1167
        %v1169 = vmul.f32 %v1168, 1.442695
        %v1170 = vpow.pop %v1169
        %v1171 = vrot.slane %v1170, 4
        %v1172 = vadd.f32 %v1170, %v1171
        %v1173 = vrot.slane %v1172, 2
        %v1174 = vadd.f32 %v1172, %v1173
        %v1175 = vrot.slane %v1174, 1
        %v1176 = vadd.f32 %v1174, %v1175
        %v1177 = vrcp.pop %v1176
        %v1178 = vmul.f32 %v1170, %v1177
        %v1179 = vadd.f32 %v1098, %v1178
        %v1180 = vmul.f32 %v829, %v752
        %v1181 = vrot.slane %v1180, 4
        %v1182 = vadd.f32 %v1180, %v1181
        %v1183 = vrot.slane %v1182, 2
        %v1184 = vadd.f32 %v1182, %v1183
        %v1185 = vrot.slane %v1184, 1
        %v1186 = vadd.f32 %v1184, %v1185
        %v1187 = vmul.f32 %v829, %v754
        %v1188 = vrot.slane %v1187, 4
        %v1189 = vadd.f32 %v1187, %v1188
        %v1190 = vrot.slane %v1189, 2
        %v1191 = vadd.f32 %v1189, %v1190
        %v1192 = vrot.slane %v1191, 1
        %v1193 = vadd.f32 %v1191, %v1192
        %v1194 = vmul.f32 %v829, %v835
        %v1195 = vrot.slane %v1194, 4
        %v1196 = vadd.f32 %v1194, %v1195
        %v1197 = vrot.slane %v1196, 2
        %v1198 = vadd.f32 %v1196, %v1197
        %v1199 = vrot.slane %v1198, 1
        %v1200 = vadd.f32 %v1198, %v1199
        %v1201 = vmul.f32 %v829, %v837
        %v1202 = vrot.slane %v1201, 4
        %v1203 = vadd.f32 %v1201, %v1202
        %v1204 = vrot.slane %v1203, 2
        %v1205 = vadd.f32 %v1203, %v1204
        %v1206 = vrot.slane %v1205, 1
        %v1207 = vadd.f32 %v1205, %v1206
        %v1208 = vmul.f32 %v829, %v918
        %v1209 = vrot.slane %v1208, 4
        %v1210 = vadd.f32 %v1208, %v1209
        %v1211 = vrot.slane %v1210, 2
        %v1212 = vadd.f32 %v1210, %v1211
        %v1213 = vrot.slane %v1212, 1
        %v1214 = vadd.f32 %v1212, %v1213
        %v1215 = vmul.f32 %v829, %v920
        %v1216 = vrot.slane %v1215, 4
        %v1217 = vadd.f32 %v1215, %v1216
        %v1218 = vrot.slane %v1217, 2
        %v1219 = vadd.f32 %v1217, %v1218
        %v1220 = vrot.slane %v1219, 1
        %v1221 = vadd.f32 %v1219, %v1220
        %v1222 = vmul.f32 %v829, %v1001
        %v1223 = vrot.slane %v1222, 4
        %v1224 = vadd.f32 %v1222, %v1223
        %v1225 = vrot.slane %v1224, 2
        %v1226 = vadd.f32 %v1224, %v1225
        %v1227 = vrot.slane %v1226, 1
        %v1228 = vadd.f32 %v1226, %v1227
        %v1229 = vmul.f32 %v829, %v1003
        %v1230 = vrot.slane %v1229, 4
        %v1231 = vadd.f32 %v1229, %v1230
        %v1232 = vrot.slane %v1231, 2
        %v1233 = vadd.f32 %v1231, %v1232
        %v1234 = vrot.slane %v1233, 1
        %v1235 = vadd.f32 %v1233, %v1234
        %v1236 = vsel %vm1067, %v1186, %v1193
        %v1237 = vsel %vm1069, %v1236, %v1200
        %v1238 = vsel %vm1071, %v1237, %v1207
        %v1239 = vsel %vm1073, %v1238, %v1214
        %v1240 = vsel %vm1075, %v1239, %v1221
        %v1241 = vsel %vm1077, %v1240, %v1228
        %v1242 = vsel %vm1079, %v1241, %v1235
        %v1243 = vrot.slane %v1242, 4
        %v1244 = vmax.f32 %v1242, %v1243
        %v1245 = vrot.slane %v1244, 2
        %v1246 = vmax.f32 %v1244, %v1245
        %v1247 = vrot.slane %v1246, 1
        %v1248 = vmax.f32 %v1246, %v1247
        %v1249 = vsub.f32 %v1242, %v1248
        %v1250 = vmul.f32 %v1249, 1.442695
        %v1251 = vpow.pop %v1250
        %v1252 = vrot.slane %v1251, 4
        %v1253 = vadd.f32 %v1251, %v1252
        %v1254 = vrot.slane %v1253, 2
        %v1255 = vadd.f32 %v1253, %v1254
        %v1256 = vrot.slane %v1255, 1
        %v1257 = vadd.f32 %v1255, %v1256
        %v1258 = vrcp.pop %v1257
        %v1259 = vmul.f32 %v1251, %v1258
        %v1260 = vadd.f32 %v1179, %v1259
        %v1261 = vmul.f32 %v831, %v752
        %v1262 = vrot.slane %v1261, 4
        %v1263 = vadd.f32 %v1261, %v1262
        %v1264 = vrot.slane %v1263, 2
        %v1265 = vadd.f32 %v1263, %v1264
        %v1266 = vrot.slane %v1265, 1
        %v1267 = vadd.f32 %v1265, %v1266
        %v1268 = vmul.f32 %v831, %v754
        %v1269 = vrot.slane %v1268, 4
        %v1270 = vadd.f32 %v1268, %v1269
        %v1271 = vrot.slane %v1270, 2
        %v1272 = vadd.f32 %v1270, %v1271
        %v1273 = vrot.slane %v1272, 1
        %v1274 = vadd.f32 %v1272, %v1273
        %v1275 = vmul.f32 %v831, %v835
        %v1276 = vrot.slane %v1275, 4
        %v1277 = vadd.f32 %v1275, %v1276
        %v1278 = vrot.slane %v1277, 2
        %v1279 = vadd.f32 %v1277, %v1278
        %v1280 = vrot.slane %v1279, 1
        %v1281 = vadd.f32 %v1279, %v1280
        %v1282 = vmul.f32 %v831, %v837
        %v1283 = vrot.slane %v1282, 4
        %v1284 = vadd.f32 %v1282, %v1283
        %v1285 = vrot.slane %v1284, 2
        %v1286 = vadd.f32 %v1284, %v1285
        %v1287 = vrot.slane %v1286, 1
        %v1288 = vadd.f32 %v1286, %v1287
        %v1289 = vmul.f32 %v831, %v918
        %v1290 = vrot.slane %v1289, 4
        %v1291 = vadd.f32 %v1289, %v1290
        %v1292 = vrot.slane %v1291, 2
        %v1293 = vadd.f32 %v1291, %v1292
        %v1294 = vrot.slane %v1293, 1
        %v1295 = vadd.f32 %v1293, %v1294
        %v1296 = vmul.f32 %v831, %v920
        %v1297 = vrot.slane %v1296, 4
        %v1298 = vadd.f32 %v1296, %v1297
        %v1299 = vrot.slane %v1298, 2
        %v1300 = vadd.f32 %v1298, %v1299
        %v1301 = vrot.slane %v1300, 1
        %v1302 = vadd.f32 %v1300, %v1301
        %v1303 = vmul.f32 %v831, %v1001
        %v1304 = vrot.slane %v1303, 4
        %v1305 = vadd.f32 %v1303, %v1304
        %v1306 = vrot.slane %v1305, 2
        %v1307 = vadd.f32 %v1305, %v1306
        %v1308 = vrot.slane %v1307, 1
        %v1309 = vadd.f32 %v1307, %v1308
        %v1310 = vmul.f32 %v831, %v1003
        %v1311 = vrot.slane %v1310, 4
        %v1312 = vadd.f32 %v1310, %v1311
        %v1313 = vrot.slane %v1312, 2
        %v1314 = vadd.f32 %v1312, %v1313
        %v1315 = vrot.slane %v1314, 1
        %v1316 = vadd.f32 %v1314, %v1315
        %v1317 = vsel %vm1067, %v1267, %v1274
        %v1318 = vsel %vm1069, %v1317, %v1281
        %v1319 = vsel %vm1071, %v1318, %v1288
        %v1320 = vsel %vm1073, %v1319, %v1295
        %v1321 = vsel %vm1075, %v1320, %v1302
        %v1322 = vsel %vm1077, %v1321, %v1309
        %v1323 = vsel %vm1079, %v1322, %v1316
        %v1324 = vrot.slane %v1323, 4
        %v1325 = vmax.f32 %v1323, %v1324
        %v1326 = vrot.slane %v1325, 2
        %v1327 = vmax.f32 %v1325, %v1326
        %v1328 = vrot.slane %v1327, 1
        %v1329 = vmax.f32 %v1327, %v1328
        %v1330 = vsub.f32 %v1323, %v1329
        %v1331 = vmul.f32 %v1330, 1.442695
        %v1332 = vpow.pop %v1331
        %v1333 = vrot.slane %v1332, 4
        %v1334 = vadd.f32 %v1332, %v1333
        %v1335 = vrot.slane %v1334, 2
        %v1336 = vadd.f32 %v1334, %v1335
        %v1337 = vrot.slane %v1336, 1
        %v1338 = vadd.f32 %v1336, %v1337
        %v1339 = vrcp.pop %v1338
        %v1340 = vmul.f32 %v1332, %v1339
        %v1341 = vadd.f32 %v1260, %v1340
        %v1342 = vmul.f32 %v912, %v752
        %v1343 = vrot.slane %v1342, 4
        %v1344 = vadd.f32 %v1342, %v1343
        %v1345 = vrot.slane %v1344, 2
        %v1346 = vadd.f32 %v1344, %v1345
        %v1347 = vrot.slane %v1346, 1
        %v1348 = vadd.f32 %v1346, %v1347
        %v1349 = vmul.f32 %v912, %v754
        %v1350 = vrot.slane %v1349, 4
        %v1351 = vadd.f32 %v1349, %v1350
        %v1352 = vrot.slane %v1351, 2
        %v1353 = vadd.f32 %v1351, %v1352
        %v1354 = vrot.slane %v1353, 1
        %v1355 = vadd.f32 %v1353, %v1354
        %v1356 = vmul.f32 %v912, %v835
        %v1357 = vrot.slane %v1356, 4
        %v1358 = vadd.f32 %v1356, %v1357
        %v1359 = vrot.slane %v1358, 2
        %v1360 = vadd.f32 %v1358, %v1359
        %v1361 = vrot.slane %v1360, 1
        %v1362 = vadd.f32 %v1360, %v1361
        %v1363 = vmul.f32 %v912, %v837
        %v1364 = vrot.slane %v1363, 4
        %v1365 = vadd.f32 %v1363, %v1364
        %v1366 = vrot.slane %v1365, 2
        %v1367 = vadd.f32 %v1365, %v1366
        %v1368 = vrot.slane %v1367, 1
        %v1369 = vadd.f32 %v1367, %v1368
        %v1370 = vmul.f32 %v912, %v918
        %v1371 = vrot.slane %v1370, 4
        %v1372 = vadd.f32 %v1370, %v1371
        %v1373 = vrot.slane %v1372, 2
        %v1374 = vadd.f32 %v1372, %v1373
        %v1375 = vrot.slane %v1374, 1
        %v1376 = vadd.f32 %v1374, %v1375
        %v1377 = vmul.f32 %v912, %v920
        %v1378 = vrot.slane %v1377, 4
        %v1379 = vadd.f32 %v1377, %v1378
        %v1380 = vrot.slane %v1379, 2
        %v1381 = vadd.f32 %v1379, %v1380
        %v1382 = vrot.slane %v1381, 1
        %v1383 = vadd.f32 %v1381, %v1382
        %v1384 = vmul.f32 %v912, %v1001
        %v1385 = vrot.slane %v1384, 4
        %v1386 = vadd.f32 %v1384, %v1385
        %v1387 = vrot.slane %v1386, 2
        %v1388 = vadd.f32 %v1386, %v1387
        %v1389 = vrot.slane %v1388, 1
        %v1390 = vadd.f32 %v1388, %v1389
        %v1391 = vmul.f32 %v912, %v1003
        %v1392 = vrot.slane %v1391, 4
        %v1393 = vadd.f32 %v1391, %v1392
        %v1394 = vrot.slane %v1393, 2
        %v1395 = vadd.f32 %v1393, %v1394
        %v1396 = vrot.slane %v1395, 1
        %v1397 = vadd.f32 %v1395, %v1396
        %v1398 = vsel %vm1067, %v1348, %v1355
        %v1399 = vsel %vm1069, %v1398, %v1362
        %v1400 = vsel %vm1071, %v1399, %v1369
        %v1401 = vsel %vm1073, %v1400, %v1376
        %v1402 = vsel %vm1075, %v1401, %v1383
        %v1403 = vsel %vm1077, %v1402, %v1390
        %v1404 = vsel %vm1079, %v1403, %v1397
        %v1405 = vrot.slane %v1404, 4
        %v1406 = vmax.f32 %v1404, %v1405
        %v1407 = vrot.slane %v1406, 2
        %v1408 = vmax.f32 %v1406, %v1407
        %v1409 = vrot.slane %v1408, 1
        %v1410 = vmax.f32 %v1408, %v1409
        %v1411 = vsub.f32 %v1404, %v1410
        %v1412 = vmul.f32 %v1411, 1.442695
        %v1413 = vpow.pop %v1412
        %v1414 = vrot.slane %v1413, 4
        %v1415 = vadd.f32 %v1413, %v1414
        %v1416 = vrot.slane %v1415, 2
        %v1417 = vadd.f32 %v1415, %v1416
        %v1418 = vrot.slane %v1417, 1
        %v1419 = vadd.f32 %v1417, %v1418
        %v1420 = vrcp.pop %v1419
        %v1421 = vmul.f32 %v1413, %v1420
        %v1422 = vadd.f32 %v1341, %v1421
        %v1423 = vmul.f32 %v914, %v752
        %v1424 = vrot.slane %v1423, 4
        %v1425 = vadd.f32 %v1423, %v1424
        %v1426 = vrot.slane %v1425, 2
        %v1427 = vadd.f32 %v1425, %v1426
        %v1428 = vrot.slane %v1427, 1
        %v1429 = vadd.f32 %v1427, %v1428
        %v1430 = vmul.f32 %v914, %v754
        %v1431 = vrot.slane %v1430, 4
        %v1432 = vadd.f32 %v1430, %v1431
        %v1433 = vrot.slane %v1432, 2
        %v1434 = vadd.f32 %v1432, %v1433
        %v1435 = vrot.slane %v1434, 1
        %v1436 = vadd.f32 %v1434, %v1435
        %v1437 = vmul.f32 %v914, %v835
        %v1438 = vrot.slane %v1437, 4
        %v1439 = vadd.f32 %v1437, %v1438
        %v1440 = vrot.slane %v1439, 2
        %v1441 = vadd.f32 %v1439, %v1440
        %v1442 = vrot.slane %v1441, 1
        %v1443 = vadd.f32 %v1441, %v1442
        %v1444 = vmul.f32 %v914, %v837
        %v1445 = vrot.slane %v1444, 4
        %v1446 = vadd.f32 %v1444, %v1445
        %v1447 = vrot.slane %v1446, 2
        %v1448 = vadd.f32 %v1446, %v1447
        %v1449 = vrot.slane %v1448, 1
        %v1450 = vadd.f32 %v1448, %v1449
        %v1451 = vmul.f32 %v914, %v918
        %v1452 = vrot.slane %v1451, 4
        %v1453 = vadd.f32 %v1451, %v1452
        %v1454 = vrot.slane %v1453, 2
        %v1455 = vadd.f32 %v1453, %v1454
        %v1456 = vrot.slane %v1455, 1
        %v1457 = vadd.f32 %v1455, %v1456
        %v1458 = vmul.f32 %v914, %v920
        %v1459 = vrot.slane %v1458, 4
        %v1460 = vadd.f32 %v1458, %v1459
        %v1461 = vrot.slane %v1460, 2
        %v1462 = vadd.f32 %v1460, %v1461
        %v1463 = vrot.slane %v1462, 1
        %v1464 = vadd.f32 %v1462, %v1463
        %v1465 = vmul.f32 %v914, %v1001
        %v1466 = vrot.slane %v1465, 4
        %v1467 = vadd.f32 %v1465, %v1466
        %v1468 = vrot.slane %v1467, 2
        %v1469 = vadd.f32 %v1467, %v1468
        %v1470 = vrot.slane %v1469, 1
        %v1471 = vadd.f32 %v1469, %v1470
        %v1472 = vmul.f32 %v914, %v1003
        %v1473 = vrot.slane %v1472, 4
        %v1474 = vadd.f32 %v1472, %v1473
        %v1475 = vrot.slane %v1474, 2
        %v1476 = vadd.f32 %v1474, %v1475
        %v1477 = vrot.slane %v1476, 1
        %v1478 = vadd.f32 %v1476, %v1477
        %v1479 = vsel %vm1067, %v1429, %v1436
        %v1480 = vsel %vm1069, %v1479, %v1443
        %v1481 = vsel %vm1071, %v1480, %v1450
        %v1482 = vsel %vm1073, %v1481, %v1457
        %v1483 = vsel %vm1075, %v1482, %v1464
        %v1484 = vsel %vm1077, %v1483, %v1471
        %v1485 = vsel %vm1079, %v1484, %v1478
        %v1486 = vrot.slane %v1485, 4
        %v1487 = vmax.f32 %v1485, %v1486
        %v1488 = vrot.slane %v1487, 2
        %v1489 = vmax.f32 %v1487, %v1488
        %v1490 = vrot.slane %v1489, 1
        %v1491 = vmax.f32 %v1489, %v1490
        %v1492 = vsub.f32 %v1485, %v1491
        %v1493 = vmul.f32 %v1492, 1.442695
        %v1494 = vpow.pop %v1493
        %v1495 = vrot.slane %v1494, 4
        %v1496 = vadd.f32 %v1494, %v1495
        %v1497 = vrot.slane %v1496, 2
        %v1498 = vadd.f32 %v1496, %v1497
        %v1499 = vrot.slane %v1498, 1
        %v1500 = vadd.f32 %v1498, %v1499
        %v1501 = vrcp.pop %v1500
        %v1502 = vmul.f32 %v1494, %v1501
        %v1503 = vadd.f32 %v1422, %v1502
        %v1504 = vmul.f32 %v995, %v752
        %v1505 = vrot.slane %v1504, 4
        %v1506 = vadd.f32 %v1504, %v1505
        %v1507 = vrot.slane %v1506, 2
        %v1508 = vadd.f32 %v1506, %v1507
        %v1509 = vrot.slane %v1508, 1
        %v1510 = vadd.f32 %v1508, %v1509
        %v1511 = vmul.f32 %v995, %v754
        %v1512 = vrot.slane %v1511, 4
        %v1513 = vadd.f32 %v1511, %v1512
        %v1514 = vrot.slane %v1513, 2
        %v1515 = vadd.f32 %v1513, %v1514
        %v1516 = vrot.slane %v1515, 1
        %v1517 = vadd.f32 %v1515, %v1516
        %v1518 = vmul.f32 %v995, %v835
        %v1519 = vrot.slane %v1518, 4
        %v1520 = vadd.f32 %v1518, %v1519
        %v1521 = vrot.slane %v1520, 2
        %v1522 = vadd.f32 %v1520, %v1521
        %v1523 = vrot.slane %v1522, 1
        %v1524 = vadd.f32 %v1522, %v1523
        %v1525 = vmul.f32 %v995, %v837
        %v1526 = vrot.slane %v1525, 4
        %v1527 = vadd.f32 %v1525, %v1526
        %v1528 = vrot.slane %v1527, 2
        %v1529 = vadd.f32 %v1527, %v1528
        %v1530 = vrot.slane %v1529, 1
        %v1531 = vadd.f32 %v1529, %v1530
        %v1532 = vmul.f32 %v995, %v918
        %v1533 = vrot.slane %v1532, 4
        %v1534 = vadd.f32 %v1532, %v1533
        %v1535 = vrot.slane %v1534, 2
        %v1536 = vadd.f32 %v1534, %v1535
        %v1537 = vrot.slane %v1536, 1
        %v1538 = vadd.f32 %v1536, %v1537
        %v1539 = vmul.f32 %v995, %v920
        %v1540 = vrot.slane %v1539, 4
        %v1541 = vadd.f32 %v1539, %v1540
        %v1542 = vrot.slane %v1541, 2
        %v1543 = vadd.f32 %v1541, %v1542
        %v1544 = vrot.slane %v1543, 1
        %v1545 = vadd.f32 %v1543, %v1544
        %v1546 = vmul.f32 %v995, %v1001
        %v1547 = vrot.slane %v1546, 4
        %v1548 = vadd.f32 %v1546, %v1547
        %v1549 = vrot.slane %v1548, 2
        %v1550 = vadd.f32 %v1548, %v1549
        %v1551 = vrot.slane %v1550, 1
        %v1552 = vadd.f32 %v1550, %v1551
        %v1553 = vmul.f32 %v995, %v1003
        %v1554 = vrot.slane %v1553, 4
        %v1555 = vadd.f32 %v1553, %v1554
        %v1556 = vrot.slane %v1555, 2
        %v1557 = vadd.f32 %v1555, %v1556
        %v1558 = vrot.slane %v1557, 1
        %v1559 = vadd.f32 %v1557, %v1558
        %v1560 = vsel %vm1067, %v1510, %v1517
        %v1561 = vsel %vm1069, %v1560, %v1524
        %v1562 = vsel %vm1071, %v1561, %v1531
        %v1563 = vsel %vm1073, %v1562, %v1538
        %v1564 = vsel %vm1075, %v1563, %v1545
        %v1565 = vsel %vm1077, %v1564, %v1552
        %v1566 = vsel %vm1079, %v1565, %v1559
        %v1567 = vrot.slane %v1566, 4
        %v1568 = vmax.f32 %v1566, %v1567
        %v1569 = vrot.slane %v1568, 2
        %v1570 = vmax.f32 %v1568, %v1569
        %v1571 = vrot.slane %v1570, 1
        %v1572 = vmax.f32 %v1570, %v1571
        %v1573 = vsub.f32 %v1566, %v1572
        %v1574 = vmul.f32 %v1573, 1.442695
        %v1575 = vpow.pop %v1574
        %v1576 = vrot.slane %v1575, 4
        %v1577 = vadd.f32 %v1575, %v1576
        %v1578 = vrot.slane %v1577, 2
        %v1579 = vadd.f32 %v1577, %v1578
        %v1580 = vrot.slane %v1579, 1
        %v1581 = vadd.f32 %v1579, %v1580
        %v1582 = vrcp.pop %v1581
        %v1583 = vmul.f32 %v1575, %v1582
        %v1584 = vadd.f32 %v1503, %v1583
        %v1585 = vmul.f32 %v997, %v752
        %v1586 = vrot.slane %v1585, 4
        %v1587 = vadd.f32 %v1585, %v1586
        %v1588 = vrot.slane %v1587, 2
        %v1589 = vadd.f32 %v1587, %v1588
        %v1590 = vrot.slane %v1589, 1
        %v1591 = vadd.f32 %v1589, %v1590
        %v1592 = vmul.f32 %v997, %v754
        %v1593 = vrot.slane %v1592, 4
        %v1594 = vadd.f32 %v1592, %v1593
        %v1595 = vrot.slane %v1594, 2
        %v1596 = vadd.f32 %v1594, %v1595
        %v1597 = vrot.slane %v1596, 1
        %v1598 = vadd.f32 %v1596, %v1597
        %v1599 = vmul.f32 %v997, %v835
        %v1600 = vrot.slane %v1599, 4
        %v1601 = vadd.f32 %v1599, %v1600
        %v1602 = vrot.slane %v1601, 2
        %v1603 = vadd.f32 %v1601, %v1602
        %v1604 = vrot.slane %v1603, 1
        %v1605 = vadd.f32 %v1603, %v1604
        %v1606 = vmul.f32 %v997, %v837
        %v1607 = vrot.slane %v1606, 4
        %v1608 = vadd.f32 %v1606, %v1607
        %v1609 = vrot.slane %v1608, 2
        %v1610 = vadd.f32 %v1608, %v1609
        %v1611 = vrot.slane %v1610, 1
        %v1612 = vadd.f32 %v1610, %v1611
        %v1613 = vmul.f32 %v997, %v918
        %v1614 = vrot.slane %v1613, 4
        %v1615 = vadd.f32 %v1613, %v1614
        %v1616 = vrot.slane %v1615, 2
        %v1617 = vadd.f32 %v1615, %v1616
        %v1618 = vrot.slane %v1617, 1
        %v1619 = vadd.f32 %v1617, %v1618
        %v1620 = vmul.f32 %v997, %v920
        %v1621 = vrot.slane %v1620, 4
        %v1622 = vadd.f32 %v1620, %v1621
        %v1623 = vrot.slane %v1622, 2
        %v1624 = vadd.f32 %v1622, %v1623
        %v1625 = vrot.slane %v1624, 1
        %v1626 = vadd.f32 %v1624, %v1625
        %v1627 = vmul.f32 %v997, %v1001
        %v1628 = vrot.slane %v1627, 4
        %v1629 = vadd.f32 %v1627, %v1628
        %v1630 = vrot.slane %v1629, 2
        %v1631 = vadd.f32 %v1629, %v1630
        %v1632 = vrot.slane %v1631, 1
        %v1633 = vadd.f32 %v1631, %v1632
        %v1634 = vmul.f32 %v997, %v1003
        %v1635 = vrot.slane %v1634, 4
        %v1636 = vadd.f32 %v1634, %v1635
        %v1637 = vrot.slane %v1636, 2
        %v1638 = vadd.f32 %v1636, %v1637
        %v1639 = vrot.slane %v1638, 1
        %v1640 = vadd.f32 %v1638, %v1639
        %v1641 = vsel %vm1067, %v1591, %v1598
        %v1642 = vsel %vm1069, %v1641, %v1605
        %v1643 = vsel %vm1071, %v1642, %v1612
        %v1644 = vsel %vm1073, %v1643, %v1619
        %v1645 = vsel %vm1075, %v1644, %v1626
        %v1646 = vsel %vm1077, %v1645, %v1633
        %v1647 = vsel %vm1079, %v1646, %v1640
        %v1648 = vrot.slane %v1647, 4
        %v1649 = vmax.f32 %v1647, %v1648
        %v1650 = vrot.slane %v1649, 2
        %v1651 = vmax.f32 %v1649, %v1650
        %v1652 = vrot.slane %v1651, 1
        %v1653 = vmax.f32 %v1651, %v1652
        %v1654 = vsub.f32 %v1647, %v1653
        %v1655 = vmul.f32 %v1654, 1.442695
        %v1656 = vpow.pop %v1655
        %v1657 = vrot.slane %v1656, 4
        %v1658 = vadd.f32 %v1656, %v1657
        %v1659 = vrot.slane %v1658, 2
        %v1660 = vadd.f32 %v1658, %v1659
        %v1661 = vrot.slane %v1660, 1
        %v1662 = vadd.f32 %v1660, %v1661
        %v1663 = vrcp.pop %v1662
        %v1664 = vmul.f32 %v1656, %v1663
        %v1665 = vadd.f32 %v1584, %v1664
        %v1666 = vmul.f32 %v1665, 0.125
        %v1667 = vlaneseq
        %v1668 = vshrl.u32 %v1667, 7
        %v1669 = vsub.s32 0, %v1668
        %v1670 = vrot.slane %v1666, %v1669
        %v1671 = vmul.f32 %v1670, %v758
        %v1672 = vadd.f32 %v1671, 0.0
        %v1673 = vlaneseq
        %v1674 = vshrl.u32 %v1673, 7
        %v1675 = vsub.s32 1, %v1674
        %v1676 = vrot.slane %v1666, %v1675
        %v1677 = vmul.f32 %v1676, %v760
        %v1678 = vadd.f32 %v1672, %v1677
        %v1679 = vlaneseq
        %v1680 = vshrl.u32 %v1679, 7
        %v1681 = vsub.s32 2, %v1680
        %v1682 = vrot.slane %v1666, %v1681
        %v1683 = vmul.f32 %v1682, %v841
        %v1684 = vadd.f32 %v1678, %v1683
        %v1685 = vlaneseq
        %v1686 = vshrl.u32 %v1685, 7
        %v1687 = vsub.s32 3, %v1686
        %v1688 = vrot.slane %v1666, %v1687
        %v1689 = vmul.f32 %v1688, %v843
        %v1690 = vadd.f32 %v1684, %v1689
        %v1691 = vlaneseq
        %v1692 = vshrl.u32 %v1691, 7
        %v1693 = vsub.s32 4, %v1692
        %v1694 = vrot.slane %v1666, %v1693
        %v1695 = vmul.f32 %v1694, %v924
        %v1696 = vadd.f32 %v1690, %v1695
        %v1697 = vlaneseq
        %v1698 = vshrl.u32 %v1697, 7
        %v1699 = vsub.s32 5, %v1698
        %v1700 = vrot.slane %v1666, %v1699
        %v1701 = vmul.f32 %v1700, %v926
        %v1702 = vadd.f32 %v1696, %v1701
        %v1703 = vlaneseq
        %v1704 = vshrl.u32 %v1703, 7
        %v1705 = vsub.s32 6, %v1704
        %v1706 = vrot.slane %v1666, %v1705
        %v1707 = vmul.f32 %v1706, %v1007
        %v1708 = vadd.f32 %v1702, %v1707
        %v1709 = vlaneseq
        %v1710 = vshrl.u32 %v1709, 7
        %v1711 = vsub.s32 7, %v1710
        %v1712 = vrot.slane %v1666, %v1711
        %v1713 = vmul.f32 %v1712, %v1009
        %v1714 = vadd.f32 %v1708, %v1713
        %v1715 = vld [vmem:[%s5] sm:$0xff]
        %v1716 = vld [vmem:[%s6] sm:$0xff]
        %1718 = vset.pattern.permute.xlu0 0
        %1719 = vperm.xlu0 %1718, %v1716
        %v1720 = vpop.permute.xlu0 %1719
        %v1723 = vsel %vm669, %v1715, 0
        %1725 = vmatprep.subr.mxu0 0.0
        %1726 = vmatpush1.msra.mxu0 0.0
        %1727 = vmatprep.subr.mxu0 0.0
        %1728 = vmatpush1.msra.mxu0 0.0
        %1729 = vmatprep.subr.mxu0 0.0
        %1730 = vmatpush1.msra.mxu0 0.0
        %1731 = vmatprep.subr.mxu0 0.0
        %1732 = vmatpush1.msra.mxu0 0.0
        %1733 = vmatprep.subr.mxu0 0.0
        %1734 = vmatpush1.msra.mxu0 0.0
        %1735 = vmatprep.subr.mxu0 0.0
        %1736 = vmatpush1.msra.mxu0 0.0
        %1737 = vmatprep.subr.mxu0 0.0
        %1738 = vmatpush1.msra.mxu0 0.0
        %1739 = vmatprep.subr.mxu0 0.0
        %1740 = vmatpush1.msra.mxu0 0.0
        %1741 = vmatprep.subr.mxu0 0.0
        %1742 = vmatpush1.msra.mxu0 0.0
        %1743 = vmatprep.subr.mxu0 0.0
        %1744 = vmatpush1.msra.mxu0 0.0
        %1745 = vmatprep.subr.mxu0 0.0
        %1746 = vmatpush1.msra.mxu0 0.0
        %1747 = vmatprep.subr.mxu0 0.0
        %1748 = vmatpush1.msra.mxu0 0.0
        %1749 = vmatprep.subr.mxu0 0.0
        %1750 = vmatpush1.msra.mxu0 0.0
        %1751 = vmatprep.subr.mxu0 0.0
        %1752 = vmatpush1.msra.mxu0 0.0
        %1753 = vmatprep.subr.mxu0 0.0
        %1754 = vmatpush1.msra.mxu0 0.0
        %1755 = vmatprep.subr.mxu0 0.0
        %1756 = vmatpush1.msra.mxu0 %v1714
        %1757 = vmatprep.subr.mxu0 0.0
        %1758 = vmatpush2.msra.mxu0 0.0
        %1759 = vmatprep.subr.mxu0 0.0
        %1760 = vmatpush2.msra.mxu0 0.0
        %1761 = vmatprep.subr.mxu0 0.0
        %1762 = vmatpush2.msra.mxu0 0.0
        %1763 = vmatprep.subr.mxu0 0.0
        %1764 = vmatpush2.msra.mxu0 0.0
        %1765 = vmatprep.subr.mxu0 0.0
        %1766 = vmatpush2.msra.mxu0 0.0
        %1767 = vmatprep.subr.mxu0 0.0
        %1768 = vmatpush2.msra.mxu0 0.0
        %1769 = vmatprep.subr.mxu0 0.0
        %1770 = vmatpush2.msra.mxu0 0.0
        %1771 = vmatprep.subr.mxu0 0.0
        %1772 = vmatpush2.msra.mxu0 0.0
        %1773 = vmatprep.subr.mxu0 0.0
        %1774 = vmatpush2.msra.mxu0 0.0
        %1775 = vmatprep.subr.mxu0 0.0
        %1776 = vmatpush2.msra.mxu0 0.0
        %1777 = vmatprep.subr.mxu0 0.0
        %1778 = vmatpush2.msra.mxu0 0.0
        %1779 = vmatprep.subr.mxu0 0.0
        %1780 = vmatpush2.msra.mxu0 0.0
        %1781 = vmatprep.subr.mxu0 0.0
        %1782 = vmatpush2.msra.mxu0 0.0
        %1783 = vmatprep.subr.mxu0 0.0
        %1784 = vmatpush2.msra.mxu0 0.0
        %1785 = vmatprep.subr.mxu0 0.0
        %1786 = vmatpush2.msra.mxu0 0.0
        %1787 = vmatprep.subr.mxu0 0.0
        %1788 = vmatpush2.msra.mxu0 0.0
        %1789 = vmatprep.mubr.f32.mxu0 0.0
        %1790 = vmatmul.mubr.f32.gmra.mxu0 %v1723
        %v1791 = vpop.f32.mrf.mxu0
        %v1792 = vadd.f32 %v1720, %v1791
        %v1793 = vpop.f32.mrf.mxu0
        %1794 = vdwg.mxu0
        %1795 = vst [vmem:[%s296] sm:$0xff] %v1792
        %s1796 = sand.u32 %s184, 1
        %s1797 = scalar_lea.sflag [#allocation4], %s1796
        %s1798 = sand.u32 %s184, 1
        %s1799 = smul.addr %s1798, 8
        %s1800 = scalar_lea.vmem [#allocation5], %s1799
        // Predicated region
        $region53: #{tpu_custom_call.1} parent=47 // pred_check
          %p1801 = pneg %p194
        $region54: #{tpu_custom_call.1} parent=47 // pred_check_branch
          %1803 = sbr.rel (%p1801) target = $region56
        $region55: #{tpu_custom_call.1} parent=47 // pred_region
          %s1805 = ssub.s32 128, 128
          %1806 = vsyncadd %s1797, %s1805
          %s1807 = smul.addr %s24, 128
          %s1808 = scalar_lea.hbm %s7, %s1807
          %s1810 = sshll.u32 %s1800, 4
          %s1811 = int_to_ptr.vmem [resolvable:$true] %s1810
          %1813 = dma.vmem_to_hbm [thread:$0]  %s1811, 128, %s1808, %s1797
        $region56: #{tpu_custom_call.1} parent=47 // pred_fallthru
          _
      $region48: #{tpu_custom_call.1} parent=5 // pred_fallthru
        _
      %p1814 = scmp.le.s32.totalorder 2, %s19
      // Predicated region
      $region57: #{tpu_custom_call.1} parent=5 // pred_check
        %p1815 = pneg %p1814
      $region58: #{tpu_custom_call.1} parent=5 // pred_check_branch
        %1817 = sbr.rel (%p1815) target = $region60
      $region59: #{tpu_custom_call.1} parent=5 // pred_region
        %s1818 = ssub.s32 %s19, 2
        // Predicated region
        $region61: #{tpu_custom_call.1} parent=59 // pred_check
          %p1819 = pneg %p200
        $region62: #{tpu_custom_call.1} parent=59 // pred_check_branch
          %1821 = sbr.rel (%p1819) target = $region64
        $region63: #{tpu_custom_call.1} parent=59 // pred_region
          %s1822 = sand.u32 %s185, 1
          %s1823 = scalar_lea.sflag [#allocation4], %s1822
          %s1824 = sand.u32 %s185, 1
          %s1825 = smul.addr %s1824, 8
          %s1826 = scalar_lea.vmem [#allocation5], %s1825
          %1827 = dma.done %s1823, 128
        $region64: #{tpu_custom_call.1} parent=59 // pred_fallthru
          _
      $region60: #{tpu_custom_call.1} parent=5 // pred_fallthru
        _
    $region6: #{tpu_custom_call.1} parent=1 // loop_footer
      %s23 = sadd.s32 1, %s19
    $region7: #{tpu_custom_call.1} parent=1 // loop_footer_branch
      %18 = sbr.rel target = $region3
    $region8: #{tpu_custom_call.1} parent=1 // loop_exit
      _
    %1828 = vsyncpa [#allocation3], 1
    %s1829 = scalar_lea.sflag [#allocation3], 1
    %1830 = vsyncpa %s1829, 1
    %1831 = vsyncpa [#allocation4], 1
    %s1832 = scalar_lea.sflag [#allocation4], 1
    %1833 = vsyncpa %s1832, 1

</llo_original>
